<compile_context>
chip_gen: v7x
topology: tpu7x:2x2x1
jax: 0.10.0
libtpu: 0.0.40
codegen_flags: <defaults>
</compile_context>

<pallas_src>
import functools

import jax
import jax.numpy as jnp
from jax.experimental import pallas as pl
from jax.experimental.pallas import tpu as pltpu

EPS = 1e-5
VMEM_LIMIT = 48 * 1024 * 1024   # safe on v7x (64 MiB phys); v5e/v6e could go higher


# --- Pass 1: ReLU -> 3x3 conv (single fused compact-K MXU matmul) + BN1 sums --
def conv3x3_stats_kernel(xpad_ref, w1_ref, mask_ref, y1_ref, s1_ref, *,
                         row_pitch, compute_dtype):
    # xpad_ref: (1, C, L)   row-flattened, spatially halo-padded image (pre-ReLU)
    # w1_ref  : (C, 9*C)    rows = Cout, cols = (kh, kw, Cin)
    # mask_ref: (1, S)      1.0 on real pixels, 0.0 on the 2 dead lanes per row
    # y1_ref  : (1, C, S)   conv1 output, wide-pitch layout, S = H*(W+2)
    # s1_ref  : (1, 2, C, 1) per-image [sum, sum_sq] partials for BN1
    xflat = jnp.maximum(xpad_ref[0], 0.0)        # ReLU once; zero halo stays zero
    n_wide = y1_ref.shape[-1]
    # 3x3 taps are contiguous lane slices of the row-flattened padded image.
    taps = [xflat[:, kh * row_pitch + kw:kh * row_pitch + kw + n_wide]
            for kh in range(3) for kw in range(3)]
    a = jnp.concatenate(taps, axis=0)            # (9*C, S), sublane-aligned concat
    y = jnp.dot(w1_ref[...], a.astype(compute_dtype),
                preferred_element_type=jnp.float32)          # (C, S) f32
    y1_ref[0] = y.astype(y1_ref.dtype)
    ym = y * mask_ref[...]                       # exclude dead lanes from stats
    s1_ref[0] = jnp.stack(
        [jnp.sum(ym, axis=-1, keepdims=True),
         jnp.sum(ym * ym, axis=-1, keepdims=True)], axis=0)


# --- Pass 2: BN1 (folded scale/shift) -> ReLU -> 1x1 conv + BN2 sums ----------
def bn_relu_conv1x1_stats_kernel(y1_ref, a1_ref, w2_ref, mask_ref, z_ref,
                                 s2_ref, *, compute_dtype):
    # y1_ref: (1, C, TM); a1_ref: (2, C, 1) = [scale, shift]; w2_ref: (C, C)
    y = y1_ref[0].astype(jnp.float32)
    h = jnp.maximum(y * a1_ref[0] + a1_ref[1], 0.0)
    z = jnp.dot(w2_ref[...], h.astype(compute_dtype),
                preferred_element_type=jnp.float32)          # (C, TM) f32
    z_ref[0] = z.astype(z_ref.dtype)
    zm = z * mask_ref[...]
    s2_ref[0] = jnp.stack(
        [jnp.sum(zm, axis=-1, keepdims=True),
         jnp.sum(zm * zm, axis=-1, keepdims=True)], axis=0)


# --- Pass 3: BN2 (folded) + residual add, writes NCHW output directly ---------
def bn_residual_kernel(z_ref, x_ref, a2_ref, o_ref):
    # z_ref: (1, C, H, W+2) wide-pitch conv2 output; x_ref/o_ref: (1, C, H, W)
    # a2_ref: (2, C, H, 1) = [scale, shift] (broadcast along lanes only)
    w = x_ref.shape[-1]
    z = z_ref[0][:, :, :w].astype(jnp.float32)   # drop the 2 dead lanes per row
    o_ref[0] = (x_ref[0] + z * a2_ref[0] + a2_ref[1]).astype(o_ref.dtype)


def residual_forward(x, w1, g1, b1, w2, g2, b2, *,
                     compute_dtype=jnp.bfloat16, store_dtype=jnp.bfloat16):
    """x: (N, C, H, W); w1: (C, C, 3, 3); w2: (C, C, 1, 1); g*/b*: (C,).

    compute_dtype: MXU input dtype (f32 accumulation); store_dtype: HBM dtype
    of the y1/z intermediates.  Defaults are bf16 (v5e/v6e/v7x MXU-native and
    half the HBM bytes); pass float32 for bit-for-bit-style numerics.
    """
    N, C, H, W = x.shape
    W2 = W + 2                        # wide row pitch
    S = H * W2                        # wide spatial length per image
    L = (H + 3) * W2                  # flattened padded length (+1 extra zero
                                      # row so every tap slice stays in bounds)
    count = jnp.float32(N * H * W)

    # Entry glue: spatial halo only (channels stay compact); the row-flatten
    # reshape is a free contiguous-dim merge.  No transposes anywhere.
    xpad_flat = jnp.pad(x, ((0, 0), (0, 0), (1, 2), (1, 1))).reshape(N, C, L)

    # Valid-pixel mask in the wide-pitch layout (stats only).
    mask = (jnp.arange(S) % W2 < W).astype(jnp.float32).reshape(1, S)

    # Weights in MXU layouts (compact C; for C >= 128 on v6e/v7x one would
    # additionally round tiles to 256).
    w1_mat = jnp.transpose(w1, (0, 2, 3, 1)).reshape(C, 9 * C).astype(compute_dtype)
    w2_mat = w2[:, :, 0, 0].astype(compute_dtype)

    # Pass 1: grid over images, pipelined & parallel.
    p1 = pltpu.CompilerParams(dimension_semantics=("parallel",),
                              vmem_limit_bytes=VMEM_LIMIT)
    y1, s1 = pl.pallas_call(
        functools.partial(conv3x3_stats_kernel, row_pitch=W2,
                          compute_dtype=compute_dtype),
        out_shape=(jax.ShapeDtypeStruct((N, C, S), store_dtype),
                   jax.ShapeDtypeStruct((N, 2, C, 1), jnp.float32)),
        grid=(N,),
        in_specs=[
            pl.BlockSpec((1, C, L), lambda n: (n, 0, 0)),
            pl.BlockSpec((C, 9 * C), lambda n: (0, 0)),
            pl.BlockSpec((1, S), lambda n: (0, 0)),
        ],
        out_specs=[
            pl.BlockSpec((1, C, S), lambda n: (n, 0, 0)),
            pl.BlockSpec((1, 2, C, 1), lambda n: (n, 0, 0, 0)),
        ],
        compiler_params=p1,
    )(xpad_flat, w1_mat, mask)

    def fold_bn(stats, gamma, beta):
        # Tiny cross-image (and cross-chunk) reduction + BN fold, all in f32.
        # One-pass E[x^2]-E[x]^2 (clamped at 0); fine at these counts.
        tot = jnp.sum(stats.reshape(-1, 2, C, 1), axis=0)     # (2, C, 1)
        mean = tot[0] / count
        var = jnp.maximum(tot[1] / count - mean * mean, 0.0)
        scale = gamma.astype(jnp.float32).reshape(C, 1) * jax.lax.rsqrt(var + EPS)
        shift = beta.astype(jnp.float32).reshape(C, 1) - mean * scale
        return jnp.stack([scale, shift], axis=0)              # (2, C, 1)

    a1 = fold_bn(s1, g1, b1)

    # Pass 2: BN1 + ReLU + 1x1 conv + BN2 partial stats.  Extra grid axis
    # chunks the spatial lanes when it divides into >=128 multiples (megacore
    # + pipeline depth for large images; degenerates to one chunk here).
    TM = S
    for cand in (2048, 1024, 512, 256, 128):
        if S % cand == 0:
            TM = cand
            break
    MC = S // TM
    p2 = pltpu.CompilerParams(dimension_semantics=("parallel", "parallel"),
                              vmem_limit_bytes=VMEM_LIMIT)
    z, s2 = pl.pallas_call(
        functools.partial(bn_relu_conv1x1_stats_kernel,
                          compute_dtype=compute_dtype),
        out_shape=(jax.ShapeDtypeStruct((N, C, S), store_dtype),
                   jax.ShapeDtypeStruct((N * MC, 2, C, 1), jnp.float32)),
        grid=(N, MC),
        in_specs=[
            pl.BlockSpec((1, C, TM), lambda n, m: (n, 0, m)),
            pl.BlockSpec((2, C, 1), lambda n, m: (0, 0, 0)),
            pl.BlockSpec((C, C), lambda n, m: (0, 0)),
            pl.BlockSpec((1, TM), lambda n, m: (0, m)),
        ],
        out_specs=[
            pl.BlockSpec((1, C, TM), lambda n, m: (n, 0, m)),
            pl.BlockSpec((1, 2, C, 1), lambda n, m: (n * MC + m, 0, 0, 0)),
        ],
        compiler_params=p2,
    )(y1, a1, w2_mat, mask)

    a2 = fold_bn(s2, g2, b2)

    # Pass 3: BN2 + residual add.  Reads the original unpadded x, drops the
    # wide-pitch dead lanes, writes NCHW output directly (no exit glue).
    z4 = z.reshape(N, C, H, W2)                               # free reshape
    a2b = jnp.broadcast_to(a2.reshape(2, C, 1, 1), (2, C, H, 1))
    p3 = pltpu.CompilerParams(dimension_semantics=("parallel",),
                              vmem_limit_bytes=VMEM_LIMIT)
    out = pl.pallas_call(
        bn_residual_kernel,
        out_shape=jax.ShapeDtypeStruct((N, C, H, W), x.dtype),
        grid=(N,),
        in_specs=[
            pl.BlockSpec((1, C, H, W2), lambda n: (n, 0, 0, 0)),
            pl.BlockSpec((1, C, H, W), lambda n: (n, 0, 0, 0)),
            pl.BlockSpec((2, C, H, 1), lambda n: (0, 0, 0, 0)),
        ],
        out_specs=pl.BlockSpec((1, C, H, W), lambda n: (n, 0, 0, 0)),
        compiler_params=p3,
    )(z4, x, a2b)
    return out


def residual_ref(x, w1, g1, b1, w2, g2, b2):
    """Pure-JAX reference of the PyTorch module forward (training-mode BN)."""
    def bn(t, g, b):
        mean = t.mean(axis=(0, 2, 3), keepdims=True)
        var = ((t - mean) ** 2).mean(axis=(0, 2, 3), keepdims=True)
        return ((t - mean) / jnp.sqrt(var + EPS) * g.reshape(1, -1, 1, 1)
                + b.reshape(1, -1, 1, 1))

    a = jax.nn.relu(x)
    y = jax.lax.conv_general_dilated(
        a, w1, (1, 1), 'SAME', dimension_numbers=('NCHW', 'OIHW', 'NCHW'))
    y = jax.nn.relu(bn(y, g1, b1))
    z = jax.lax.conv_general_dilated(
        y, w2, (1, 1), 'VALID', dimension_numbers=('NCHW', 'OIHW', 'NCHW'))
    z = bn(z, g2, b2)
    return x + z


if __name__ == "__main__":
    key = jax.random.PRNGKey(0)
    k_x, k_w1, k_w2, k_g1, k_b1, k_g2, k_b2 = jax.random.split(key, 7)

    N, C, H, W = 2, 8, 16, 16
    x = jax.random.normal(k_x, (N, C, H, W), jnp.float32)

    # Deterministic parameter init (Conv2d layers have bias=False in the module).
    w1 = jax.random.normal(k_w1, (C, C, 3, 3), jnp.float32) * 0.1   # Conv2d(C,C,3,1,1)
    w2 = jax.random.normal(k_w2, (C, C, 1, 1), jnp.float32) * 0.1   # Conv2d(C,C,1)
    g1 = 1.0 + 0.1 * jax.random.normal(k_g1, (C,), jnp.float32)     # BN1 gamma
    b1 = 0.1 * jax.random.normal(k_b1, (C,), jnp.float32)           # BN1 beta
    g2 = 1.0 + 0.1 * jax.random.normal(k_g2, (C,), jnp.float32)     # BN2 gamma
    b2 = 0.1 * jax.random.normal(k_b2, (C,), jnp.float32)           # BN2 beta

    ref = residual_ref(x, w1, g1, b1, w2, g2, b2)

    # 1) Strict-numerics path (f32 MXU + f32 intermediates): validates the
    #    kernel structure against the pure-JAX reference tightly.
    fwd_f32 = jax.jit(functools.partial(residual_forward,
                                        compute_dtype=jnp.float32,
                                        store_dtype=jnp.float32))
    out_f32 = jax.block_until_ready(fwd_f32(x, w1, g1, b1, w2, g2, b2))
    assert out_f32.shape == ref.shape and out_f32.dtype == ref.dtype
    err_f32 = float(jnp.max(jnp.abs(out_f32 - ref)))
    assert jnp.allclose(out_f32, ref, atol=2e-3, rtol=2e-3), err_f32

    # 2) Default perf path (bf16 MXU inputs + bf16 y1/z intermediates).
    #    Tolerance reflects bf16 epsilon propagated through two BatchNorm
    #    normalizations; structural correctness is covered by check (1).
    fwd = jax.jit(residual_forward)
    out = jax.block_until_ready(fwd(x, w1, g1, b1, w2, g2, b2))
    assert out.shape == ref.shape and out.dtype == ref.dtype
    err_bf16 = float(jnp.max(jnp.abs(out - ref)))
    assert jnp.allclose(out, ref, atol=7.5e-2, rtol=7.5e-2), err_bf16

    print("KERNEL_OK")
</pallas_src>

<mosaic_0001>
module attributes {stable_mosaic.version = 11 : i64} {
  func.func @conv3x3_stats_kernel(%arg0: i32, %arg1: memref<1x8x342xf32, #tpu.memory_space<vmem>>, %arg2: memref<8x72xf32, #tpu.memory_space<vmem>>, %arg3: memref<1x288xf32, #tpu.memory_space<vmem>>, %arg4: memref<1x8x288xf32, #tpu.memory_space<vmem>>, %arg5: memref<1x2x8x1xf32, #tpu.memory_space<vmem>>) attributes {dimension_semantics = [#tpu.dimension_semantics<parallel>], iteration_bounds = array<i64: 2>, scalar_prefetch = 0 : i64, scratch_operands = 0 : i64, tpu.core_type = #tpu.core_type<tc>, window_params = [{transform_indices = @transform_0, window_bounds = array<i64: 1, 8, 342>}, {pipeline_mode = #tpu.pipeline_mode<synchronous>, transform_indices = @transform_1, window_bounds = array<i64: 8, 72>}, {pipeline_mode = #tpu.pipeline_mode<synchronous>, transform_indices = @transform_2, window_bounds = array<i64: 1, 288>}, {transform_indices = @transform_3, window_bounds = array<i64: 1, 8, 288>}, {transform_indices = @transform_4, window_bounds = array<i64: 1, 2, 8, 1>}]} {
    %c0 = arith.constant 0 : index
    %c0_0 = arith.constant 0 : index
    %c0_1 = arith.constant 0 : index
    %0 = vector.load %arg1[%c0, %c0_0, %c0_1] : memref<1x8x342xf32, #tpu.memory_space<vmem>>, vector<1x8x342xf32>
    %1 = vector.shape_cast %0 : vector<1x8x342xf32> to vector<8x342xf32>
    %cst = arith.constant 0.000000e+00 : f32
    %2 = vector.broadcast %cst : f32 to vector<8x342xf32>
    %3 = arith.maximumf %1, %2 : vector<8x342xf32>
    %4 = vector.extract_strided_slice %3 {offsets = [0, 0], sizes = [8, 288], strides = [1, 1]} : vector<8x342xf32> to vector<8x288xf32>
    %5 = vector.extract_strided_slice %3 {offsets = [0, 1], sizes = [8, 288], strides = [1, 1]} : vector<8x342xf32> to vector<8x288xf32>
    %6 = vector.extract_strided_slice %3 {offsets = [0, 2], sizes = [8, 288], strides = [1, 1]} : vector<8x342xf32> to vector<8x288xf32>
    %7 = vector.extract_strided_slice %3 {offsets = [0, 18], sizes = [8, 288], strides = [1, 1]} : vector<8x342xf32> to vector<8x288xf32>
    %8 = vector.extract_strided_slice %3 {offsets = [0, 19], sizes = [8, 288], strides = [1, 1]} : vector<8x342xf32> to vector<8x288xf32>
    %9 = vector.extract_strided_slice %3 {offsets = [0, 20], sizes = [8, 288], strides = [1, 1]} : vector<8x342xf32> to vector<8x288xf32>
    %10 = vector.extract_strided_slice %3 {offsets = [0, 36], sizes = [8, 288], strides = [1, 1]} : vector<8x342xf32> to vector<8x288xf32>
    %11 = vector.extract_strided_slice %3 {offsets = [0, 37], sizes = [8, 288], strides = [1, 1]} : vector<8x342xf32> to vector<8x288xf32>
    %12 = vector.extract_strided_slice %3 {offsets = [0, 38], sizes = [8, 288], strides = [1, 1]} : vector<8x342xf32> to vector<8x288xf32>
    %13 = tpu.concatenate %4, %5, %6, %7, %8, %9, %10, %11, %12 in 0 : vector<8x288xf32>, vector<8x288xf32>, vector<8x288xf32>, vector<8x288xf32>, vector<8x288xf32>, vector<8x288xf32>, vector<8x288xf32>, vector<8x288xf32>, vector<8x288xf32> -> vector<72x288xf32>
    %c0_2 = arith.constant 0 : index
    %c0_3 = arith.constant 0 : index
    %14 = vector.load %arg2[%c0_2, %c0_3] : memref<8x72xf32, #tpu.memory_space<vmem>>, vector<8x72xf32>
    %cst_4 = arith.constant dense<0.000000e+00> : vector<8x288xf32>
    %15 = tpu.matmul %14, %13, %cst_4 {dimension_numbers = #tpu.dot_dimension_numbers<[1], [0], [0], [1], [0, 0, 1, 1], [], []>} : vector<8x72xf32>, vector<72x288xf32>, vector<8x288xf32> -> vector<8x288xf32>
    %c0_5 = arith.constant 0 : index
    %c0_6 = arith.constant 0 : index
    %c0_7 = arith.constant 0 : index
    %16 = vector.load %arg4[%c0_5, %c0_6, %c0_7] : memref<1x8x288xf32, #tpu.memory_space<vmem>>, vector<1x8x288xf32>
    %17 = vector.shape_cast %16 : vector<1x8x288xf32> to vector<8x288xf32>
    %18 = vector.shape_cast %15 : vector<8x288xf32> to vector<1x8x288xf32>
    tpu.vector_store %arg4[%c0_5, %c0_6, %c0_7], %18 {strides = array<i32>} : memref<1x8x288xf32, #tpu.memory_space<vmem>>, vector<1x8x288xf32>,
    %c0_8 = arith.constant 0 : index
    %c0_9 = arith.constant 0 : index
    %19 = vector.load %arg3[%c0_8, %c0_9] : memref<1x288xf32, #tpu.memory_space<vmem>>, vector<1x288xf32>
    %20 = vector.broadcast %19 : vector<1x288xf32> to vector<8x288xf32>
    %21 = arith.mulf %15, %20 : vector<8x288xf32>
    %cst_10 = arith.constant dense<0.000000e+00> : vector<8xf32>
    %22 = vector.multi_reduction <add>, %21, %cst_10 [1] : vector<8x288xf32> to vector<8xf32>
    %23 = vector.shape_cast %22 : vector<8xf32> to vector<8x1xf32>
    %24 = arith.mulf %21, %21 : vector<8x288xf32>
    %cst_11 = arith.constant dense<0.000000e+00> : vector<8xf32>
    %25 = vector.multi_reduction <add>, %24, %cst_11 [1] : vector<8x288xf32> to vector<8xf32>
    %26 = vector.shape_cast %25 : vector<8xf32> to vector<8x1xf32>
    %27 = vector.shape_cast %23 : vector<8x1xf32> to vector<1x8x1xf32>
    %28 = vector.shape_cast %26 : vector<8x1xf32> to vector<1x8x1xf32>
    %29 = tpu.concatenate %27, %28 in 0 : vector<1x8x1xf32>, vector<1x8x1xf32> -> vector<2x8x1xf32>
    %c0_12 = arith.constant 0 : index
    %c0_13 = arith.constant 0 : index
    %c0_14 = arith.constant 0 : index
    %c0_15 = arith.constant 0 : index
    %30 = vector.load %arg5[%c0_12, %c0_13, %c0_14, %c0_15] : memref<1x2x8x1xf32, #tpu.memory_space<vmem>>, vector<1x2x8x1xf32>
    %31 = vector.shape_cast %30 : vector<1x2x8x1xf32> to vector<2x8x1xf32>
    %32 = vector.shape_cast %29 : vector<2x8x1xf32> to vector<1x2x8x1xf32>
    tpu.vector_store %arg5[%c0_12, %c0_13, %c0_14, %c0_15], %32 {strides = array<i32>} : memref<1x2x8x1xf32, #tpu.memory_space<vmem>>, vector<1x2x8x1xf32>,
    return
  }
  func.func @transform_0(%arg0: i32) -> (i32, i32, i32) {
    %c0_i32 = arith.constant 0 : i32
    %c0_i32_0 = arith.constant 0 : i32
    %c0_i32_1 = arith.constant 0 : i32
    return %arg0, %c0_i32, %c0_i32_0 : i32, i32, i32
  }
  func.func @transform_1(%arg0: i32) -> (i32, i32) {
    %c0_i32 = arith.constant 0 : i32
    %c0_i32_0 = arith.constant 0 : i32
    %c0_i32_1 = arith.constant 0 : i32
    return %c0_i32, %c0_i32_0 : i32, i32
  }
  func.func @transform_2(%arg0: i32) -> (i32, i32) {
    %c0_i32 = arith.constant 0 : i32
    %c0_i32_0 = arith.constant 0 : i32
    %c0_i32_1 = arith.constant 0 : i32
    return %c0_i32, %c0_i32_0 : i32, i32
  }
  func.func @transform_3(%arg0: i32) -> (i32, i32, i32) {
    %c0_i32 = arith.constant 0 : i32
    %c0_i32_0 = arith.constant 0 : i32
    %c0_i32_1 = arith.constant 0 : i32
    return %arg0, %c0_i32, %c0_i32_0 : i32, i32, i32
  }
  func.func @transform_4(%arg0: i32) -> (i32, i32, i32, i32) {
    %c0_i32 = arith.constant 0 : i32
    %c0_i32_0 = arith.constant 0 : i32
    %c0_i32_1 = arith.constant 0 : i32
    %c0_i32_2 = arith.constant 0 : i32
    return %arg0, %c0_i32, %c0_i32_0, %c0_i32_1 : i32, i32, i32, i32
  }
}

module attributes {stable_mosaic.version = 11 : i64} {
  func.func @bn_relu_conv1x1_stats_kernel(%arg0: i32, %arg1: i32, %arg2: memref<1x8x288xf32, #tpu.memory_space<vmem>>, %arg3: memref<2x8x1xf32, #tpu.memory_space<vmem>>, %arg4: memref<8x8xf32, #tpu.memory_space<vmem>>, %arg5: memref<1x288xf32, #tpu.memory_space<vmem>>, %arg6: memref<1x8x288xf32, #tpu.memory_space<vmem>>, %arg7: memref<1x2x8x1xf32, #tpu.memory_space<vmem>>) attributes {dimension_semantics = [#tpu.dimension_semantics<parallel>, #tpu.dimension_semantics<parallel>], iteration_bounds = array<i64: 2, 1>, scalar_prefetch = 0 : i64, scratch_operands = 0 : i64, tpu.core_type = #tpu.core_type<tc>, window_params = [{transform_indices = @transform_0, window_bounds = array<i64: 1, 8, 288>}, {pipeline_mode = #tpu.pipeline_mode<synchronous>, transform_indices = @transform_1, window_bounds = array<i64: 2, 8, 1>}, {pipeline_mode = #tpu.pipeline_mode<synchronous>, transform_indices = @transform_2, window_bounds = array<i64: 8, 8>}, {transform_indices = @transform_3, window_bounds = array<i64: 1, 288>}, {transform_indices = @transform_4, window_bounds = array<i64: 1, 8, 288>}, {transform_indices = @transform_5, window_bounds = array<i64: 1, 2, 8, 1>}]} {
    %c0 = arith.constant 0 : index
    %c0_0 = arith.constant 0 : index
    %c0_1 = arith.constant 0 : index
    %0 = vector.load %arg2[%c0, %c0_0, %c0_1] : memref<1x8x288xf32, #tpu.memory_space<vmem>>, vector<1x8x288xf32>
    %1 = vector.shape_cast %0 : vector<1x8x288xf32> to vector<8x288xf32>
    %c0_2 = arith.constant 0 : index
    %c0_3 = arith.constant 0 : index
    %c0_4 = arith.constant 0 : index
    %2 = vector.load %arg3[%c0_2, %c0_3, %c0_4] : memref<2x8x1xf32, #tpu.memory_space<vmem>>, vector<1x8x1xf32>
    %3 = vector.shape_cast %2 : vector<1x8x1xf32> to vector<8x1xf32>
    %4 = vector.broadcast %3 : vector<8x1xf32> to vector<8x288xf32>
    %5 = arith.mulf %1, %4 : vector<8x288xf32>
    %c1 = arith.constant 1 : index
    %c0_5 = arith.constant 0 : index
    %c0_6 = arith.constant 0 : index
    %6 = vector.load %arg3[%c1, %c0_5, %c0_6] : memref<2x8x1xf32, #tpu.memory_space<vmem>>, vector<1x8x1xf32>
    %7 = vector.shape_cast %6 : vector<1x8x1xf32> to vector<8x1xf32>
    %8 = vector.broadcast %7 : vector<8x1xf32> to vector<8x288xf32>
    %9 = arith.addf %5, %8 : vector<8x288xf32>
    %cst = arith.constant 0.000000e+00 : f32
    %10 = vector.broadcast %cst : f32 to vector<8x288xf32>
    %11 = arith.maximumf %9, %10 : vector<8x288xf32>
    %c0_7 = arith.constant 0 : index
    %c0_8 = arith.constant 0 : index
    %12 = vector.load %arg4[%c0_7, %c0_8] : memref<8x8xf32, #tpu.memory_space<vmem>>, vector<8x8xf32>
    %cst_9 = arith.constant dense<0.000000e+00> : vector<8x288xf32>
    %13 = tpu.matmul %12, %11, %cst_9 {dimension_numbers = #tpu.dot_dimension_numbers<[1], [0], [0], [1], [0, 0, 1, 1], [], []>} : vector<8x8xf32>, vector<8x288xf32>, vector<8x288xf32> -> vector<8x288xf32>
    %c0_10 = arith.constant 0 : index
    %c0_11 = arith.constant 0 : index
    %c0_12 = arith.constant 0 : index
    %14 = vector.load %arg6[%c0_10, %c0_11, %c0_12] : memref<1x8x288xf32, #tpu.memory_space<vmem>>, vector<1x8x288xf32>
    %15 = vector.shape_cast %14 : vector<1x8x288xf32> to vector<8x288xf32>
    %16 = vector.shape_cast %13 : vector<8x288xf32> to vector<1x8x288xf32>
    tpu.vector_store %arg6[%c0_10, %c0_11, %c0_12], %16 {strides = array<i32>} : memref<1x8x288xf32, #tpu.memory_space<vmem>>, vector<1x8x288xf32>,
    %c0_13 = arith.constant 0 : index
    %c0_14 = arith.constant 0 : index
    %17 = vector.load %arg5[%c0_13, %c0_14] : memref<1x288xf32, #tpu.memory_space<vmem>>, vector<1x288xf32>
    %18 = vector.broadcast %17 : vector<1x288xf32> to vector<8x288xf32>
    %19 = arith.mulf %13, %18 : vector<8x288xf32>
    %cst_15 = arith.constant dense<0.000000e+00> : vector<8xf32>
    %20 = vector.multi_reduction <add>, %19, %cst_15 [1] : vector<8x288xf32> to vector<8xf32>
    %21 = vector.shape_cast %20 : vector<8xf32> to vector<8x1xf32>
    %22 = arith.mulf %19, %19 : vector<8x288xf32>
    %cst_16 = arith.constant dense<0.000000e+00> : vector<8xf32>
    %23 = vector.multi_reduction <add>, %22, %cst_16 [1] : vector<8x288xf32> to vector<8xf32>
    %24 = vector.shape_cast %23 : vector<8xf32> to vector<8x1xf32>
    %25 = vector.shape_cast %21 : vector<8x1xf32> to vector<1x8x1xf32>
    %26 = vector.shape_cast %24 : vector<8x1xf32> to vector<1x8x1xf32>
    %27 = tpu.concatenate %25, %26 in 0 : vector<1x8x1xf32>, vector<1x8x1xf32> -> vector<2x8x1xf32>
    %c0_17 = arith.constant 0 : index
    %c0_18 = arith.constant 0 : index
    %c0_19 = arith.constant 0 : index
    %c0_20 = arith.constant 0 : index
    %28 = vector.load %arg7[%c0_17, %c0_18, %c0_19, %c0_20] : memref<1x2x8x1xf32, #tpu.memory_space<vmem>>, vector<1x2x8x1xf32>
    %29 = vector.shape_cast %28 : vector<1x2x8x1xf32> to vector<2x8x1xf32>
    %30 = vector.shape_cast %27 : vector<2x8x1xf32> to vector<1x2x8x1xf32>
    tpu.vector_store %arg7[%c0_17, %c0_18, %c0_19, %c0_20], %30 {strides = array<i32>} : memref<1x2x8x1xf32, #tpu.memory_space<vmem>>, vector<1x2x8x1xf32>,
    return
  }
  func.func @transform_0(%arg0: i32, %arg1: i32) -> (i32, i32, i32) {
    %c0_i32 = arith.constant 0 : i32
    %c0_i32_0 = arith.constant 0 : i32
    return %arg0, %c0_i32, %arg1 : i32, i32, i32
  }
  func.func @transform_1(%arg0: i32, %arg1: i32) -> (i32, i32, i32) {
    %c0_i32 = arith.constant 0 : i32
    %c0_i32_0 = arith.constant 0 : i32
    %c0_i32_1 = arith.constant 0 : i32
    %c0_i32_2 = arith.constant 0 : i32
    return %c0_i32, %c0_i32_0, %c0_i32_1 : i32, i32, i32
  }
  func.func @transform_2(%arg0: i32, %arg1: i32) -> (i32, i32) {
    %c0_i32 = arith.constant 0 : i32
    %c0_i32_0 = arith.constant 0 : i32
    %c0_i32_1 = arith.constant 0 : i32
    return %c0_i32, %c0_i32_0 : i32, i32
  }
  func.func @transform_3(%arg0: i32, %arg1: i32) -> (i32, i32) {
    %c0_i32 = arith.constant 0 : i32
    %c0_i32_0 = arith.constant 0 : i32
    return %c0_i32, %arg1 : i32, i32
  }
  func.func @transform_4(%arg0: i32, %arg1: i32) -> (i32, i32, i32) {
    %c0_i32 = arith.constant 0 : i32
    %c0_i32_0 = arith.constant 0 : i32
    return %arg0, %c0_i32, %arg1 : i32, i32, i32
  }
  func.func @transform_5(%arg0: i32, %arg1: i32) -> (i32, i32, i32, i32) {
    %c1_i32 = arith.constant 1 : i32
    %0 = arith.muli %arg0, %c1_i32 : i32
    %1 = arith.addi %0, %arg1 : i32
    %c0_i32 = arith.constant 0 : i32
    %c0_i32_0 = arith.constant 0 : i32
    %c0_i32_1 = arith.constant 0 : i32
    %c0_i32_2 = arith.constant 0 : i32
    return %1, %c0_i32, %c0_i32_0, %c0_i32_1 : i32, i32, i32, i32
  }
}

module attributes {stable_mosaic.version = 11 : i64} {
  func.func @bn_residual_kernel(%arg0: i32, %arg1: memref<1x8x16x18xf32, #tpu.memory_space<vmem>>, %arg2: memref<1x8x16x16xf32, #tpu.memory_space<vmem>>, %arg3: memref<2x8x16x1xf32, #tpu.memory_space<vmem>>, %arg4: memref<1x8x16x16xf32, #tpu.memory_space<vmem>>) attributes {dimension_semantics = [#tpu.dimension_semantics<parallel>], iteration_bounds = array<i64: 2>, scalar_prefetch = 0 : i64, scratch_operands = 0 : i64, tpu.core_type = #tpu.core_type<tc>, window_params = [{transform_indices = @transform_0, window_bounds = array<i64: 1, 8, 16, 18>}, {transform_indices = @transform_1, window_bounds = array<i64: 1, 8, 16, 16>}, {pipeline_mode = #tpu.pipeline_mode<synchronous>, transform_indices = @transform_2, window_bounds = array<i64: 2, 8, 16, 1>}, {transform_indices = @transform_3, window_bounds = array<i64: 1, 8, 16, 16>}]} {
    %c0 = arith.constant 0 : index
    %c0_0 = arith.constant 0 : index
    %c0_1 = arith.constant 0 : index
    %c0_2 = arith.constant 0 : index
    %0 = vector.load %arg1[%c0, %c0_0, %c0_1, %c0_2] : memref<1x8x16x18xf32, #tpu.memory_space<vmem>>, vector<1x8x16x18xf32>
    %1 = vector.shape_cast %0 : vector<1x8x16x18xf32> to vector<8x16x18xf32>
    %2 = vector.extract_strided_slice %1 {offsets = [0, 0, 0], sizes = [8, 16, 16], strides = [1, 1, 1]} : vector<8x16x18xf32> to vector<8x16x16xf32>
    %c0_3 = arith.constant 0 : index
    %c0_4 = arith.constant 0 : index
    %c0_5 = arith.constant 0 : index
    %c0_6 = arith.constant 0 : index
    %3 = vector.load %arg2[%c0_3, %c0_4, %c0_5, %c0_6] : memref<1x8x16x16xf32, #tpu.memory_space<vmem>>, vector<1x8x16x16xf32>
    %4 = vector.shape_cast %3 : vector<1x8x16x16xf32> to vector<8x16x16xf32>
    %c0_7 = arith.constant 0 : index
    %c0_8 = arith.constant 0 : index
    %c0_9 = arith.constant 0 : index
    %c0_10 = arith.constant 0 : index
    %5 = vector.load %arg3[%c0_7, %c0_8, %c0_9, %c0_10] : memref<2x8x16x1xf32, #tpu.memory_space<vmem>>, vector<1x8x16x1xf32>
    %6 = vector.shape_cast %5 : vector<1x8x16x1xf32> to vector<8x16x1xf32>
    %7 = vector.broadcast %6 : vector<8x16x1xf32> to vector<8x16x16xf32>
    %8 = arith.mulf %2, %7 : vector<8x16x16xf32>
    %9 = arith.addf %4, %8 : vector<8x16x16xf32>
    %c1 = arith.constant 1 : index
    %c0_11 = arith.constant 0 : index
    %c0_12 = arith.constant 0 : index
    %c0_13 = arith.constant 0 : index
    %10 = vector.load %arg3[%c1, %c0_11, %c0_12, %c0_13] : memref<2x8x16x1xf32, #tpu.memory_space<vmem>>, vector<1x8x16x1xf32>
    %11 = vector.shape_cast %10 : vector<1x8x16x1xf32> to vector<8x16x1xf32>
    %12 = vector.broadcast %11 : vector<8x16x1xf32> to vector<8x16x16xf32>
    %13 = arith.addf %9, %12 : vector<8x16x16xf32>
    %c0_14 = arith.constant 0 : index
    %c0_15 = arith.constant 0 : index
    %c0_16 = arith.constant 0 : index
    %c0_17 = arith.constant 0 : index
    %14 = vector.load %arg4[%c0_14, %c0_15, %c0_16, %c0_17] : memref<1x8x16x16xf32, #tpu.memory_space<vmem>>, vector<1x8x16x16xf32>
    %15 = vector.shape_cast %14 : vector<1x8x16x16xf32> to vector<8x16x16xf32>
    %16 = vector.shape_cast %13 : vector<8x16x16xf32> to vector<1x8x16x16xf32>
    tpu.vector_store %arg4[%c0_14, %c0_15, %c0_16, %c0_17], %16 {strides = array<i32>} : memref<1x8x16x16xf32, #tpu.memory_space<vmem>>, vector<1x8x16x16xf32>,
    return
  }
  func.func @transform_0(%arg0: i32) -> (i32, i32, i32, i32) {
    %c0_i32 = arith.constant 0 : i32
    %c0_i32_0 = arith.constant 0 : i32
    %c0_i32_1 = arith.constant 0 : i32
    %c0_i32_2 = arith.constant 0 : i32
    return %arg0, %c0_i32, %c0_i32_0, %c0_i32_1 : i32, i32, i32, i32
  }
  func.func @transform_1(%arg0: i32) -> (i32, i32, i32, i32) {
    %c0_i32 = arith.constant 0 : i32
    %c0_i32_0 = arith.constant 0 : i32
    %c0_i32_1 = arith.constant 0 : i32
    %c0_i32_2 = arith.constant 0 : i32
    return %arg0, %c0_i32, %c0_i32_0, %c0_i32_1 : i32, i32, i32, i32
  }
  func.func @transform_2(%arg0: i32) -> (i32, i32, i32, i32) {
    %c0_i32 = arith.constant 0 : i32
    %c0_i32_0 = arith.constant 0 : i32
    %c0_i32_1 = arith.constant 0 : i32
    %c0_i32_2 = arith.constant 0 : i32
    %c0_i32_3 = arith.constant 0 : i32
    return %c0_i32, %c0_i32_0, %c0_i32_1, %c0_i32_2 : i32, i32, i32, i32
  }
  func.func @transform_3(%arg0: i32) -> (i32, i32, i32, i32) {
    %c0_i32 = arith.constant 0 : i32
    %c0_i32_0 = arith.constant 0 : i32
    %c0_i32_1 = arith.constant 0 : i32
    %c0_i32_2 = arith.constant 0 : i32
    return %arg0, %c0_i32, %c0_i32_0, %c0_i32_1 : i32, i32, i32, i32
  }
}

</mosaic_0001>

<llo_original>
// kernel: residual_forward.4
$region0: #{residual_forward.4}
  #allocation0 [shape = 'u32[]', space=smem, size = 0x4, offset = 0x4, fixed_abs, tag = 'smem constant byte address 0x4 - core index']
  #allocation1 [shape = 'u32[144,128]{1,0:T(1,128)}', space=vmem, size = 0x12000, scoped, tag = 'internal scratch']
  %s0 = inlined_call_operand.vmem [shape: f32[2,8,288], index: 0, kind: input, shape index: {}]
  %s1 = inlined_call_operand.vmem [shape: f32[2,8,1], index: 1, kind: input, shape index: {}]
  %s2 = inlined_call_operand.vmem [shape: f32[8,8], index: 2, kind: input, shape index: {}]
  %s3 = inlined_call_operand.vmem [shape: f32[1,288], index: 3, kind: input, shape index: {}]
  %s4 = inlined_call_operand.vmem [shape: f32[2,8,288], index: 4, kind: output, shape index: {0}]
  %s5 = inlined_call_operand.vmem [shape: f32[2,2,8,1], index: 5, kind: output, shape index: {1}]
  %6 = xla_tuple %s4, %s5
  %s7 = sld [smem:[#allocation0]]
  $region57: #{residual_forward.4} parent=0
    _
  %s9 = ssub.s32 1, %s7
  %s10 = scalar_select 0, %s9, %s7
  loop: start=0, step=1, limit=4
  $region2: #{residual_forward.4} parent=0 // loop_pre_header
    _
  $region3: #{residual_forward.4} parent=0 // loop_header
    %s12 = sphi 0, %s16
    %p13 = scmp.ge.s32.totalorder %s12, 4
    %s19 = sphi 0, %s31
    %s20 = sphi 0, %s27
    %s21 = sphi 0, %s19
    %s22 = sphi 0, %s20
    %s23 = sphi 0, %s21
    %s24 = sphi 0, %s22
    %s36 = sphi 0, %s38
    %s39 = sphi 0, %s36
    %s40 = sphi 0, %s39
    %s56 = sphi 0, %s40
    %s60 = sphi 0, %s60
    %s62 = sphi 0, %s60
    %s63 = sphi 0, %s62
    %s77 = sphi 0, %s63
    %s81 = sphi 0, %s81
    %s83 = sphi 0, %s81
    %s84 = sphi 0, %s83
    %s98 = sphi 0, %s84
    %s104 = sphi 0, %s106
    %s107 = sphi 0, %s104
    %s108 = sphi 0, %s107
    %s124 = sphi 0, %s108
    %s132 = sphi 0, %s134
    %s135 = sphi 0, %s132
    %s136 = sphi 0, %s135
    %s152 = sphi 0, %s136
    %s160 = sphi 0, %s162
    %s163 = sphi 0, %s160
    %s164 = sphi 0, %s163
    %s180 = sphi 0, %s164
  $region4: #{residual_forward.4} parent=0 // loop_header_branch
    %15 = sbr.rel (%p13) target = $region8
  $region5: #{residual_forward.4} parent=0 // loop_body
    %s17 = ssub.s32 %s12, 1
    %s18 = ssub.s32 %s12, 2
    %s25 = sadd.s32 1, %s20
    %p26 = scmp.ge.s32.totalorder %s25, 1
    %s27 = scalar_select %p26, 0, %s25
    %s28 = sadd.s32 1, %s19
    %s29 = scalar_select %p26, %s28, %s19
    %p30 = scmp.ge.s32.totalorder %s29, 2
    %s31 = scalar_select %p30, 0, %s29
    %s32 = ssub.s32 %s19, %s31
    %s33 = ssub.s32 %s20, %s27
    %s34 = sor.u32 %s32, %s33
    %p35 = scmp.eq.s32.totalorder %s34, 0
    %s37 = sadd.s32 %s36, 1
    %s38 = scalar_select %p35, %s36, %s37
    %p41 = pneg %p35
    %p42 = scmp.eq.s32.totalorder %s12, 1
    %p43 = por %p41, %p42
    %p44 = scmp.ne.s32.totalorder %s36, %s39
    %p45 = scmp.eq.s32.totalorder %s12, 0
    %p46 = por %p44, %p45
    %p47 = scmp.ne.s32.totalorder %s36, %s39
    %p48 = scmp.eq.s32.totalorder %s17, 1
    %p49 = por %p47, %p48
    %p50 = scmp.ne.s32.totalorder %s39, %s40
    %p51 = scmp.eq.s32.totalorder %s17, 0
    %p52 = por %p50, %p51
    %p53 = scmp.ne.s32.totalorder %s39, %s40
    %p54 = scmp.eq.s32.totalorder %s18, 1
    %p55 = por %p53, %p54
    %p57 = scmp.ne.s32.totalorder %s40, %s56
    %p58 = scmp.eq.s32.totalorder %s18, 0
    %p59 = por %p57, %p58
    %s61 = sadd.s32 %s60, 1
    %p64 = scmp.eq.s32.totalorder %s12, 1
    %p65 = scmp.ne.s32.totalorder %s60, %s62
    %p66 = scmp.eq.s32.totalorder %s12, 0
    %p67 = por %p65, %p66
    %p68 = scmp.ne.s32.totalorder %s60, %s62
    %p69 = scmp.eq.s32.totalorder %s17, 1
    %p70 = por %p68, %p69
    %p71 = scmp.ne.s32.totalorder %s62, %s63
    %p72 = scmp.eq.s32.totalorder %s17, 0
    %p73 = por %p71, %p72
    %p74 = scmp.ne.s32.totalorder %s62, %s63
    %p75 = scmp.eq.s32.totalorder %s18, 1
    %p76 = por %p74, %p75
    %p78 = scmp.ne.s32.totalorder %s63, %s77
    %p79 = scmp.eq.s32.totalorder %s18, 0
    %p80 = por %p78, %p79
    %s82 = sadd.s32 %s81, 1
    %p85 = scmp.eq.s32.totalorder %s12, 1
    %p86 = scmp.ne.s32.totalorder %s81, %s83
    %p87 = scmp.eq.s32.totalorder %s12, 0
    %p88 = por %p86, %p87
    %p89 = scmp.ne.s32.totalorder %s81, %s83
    %p90 = scmp.eq.s32.totalorder %s17, 1
    %p91 = por %p89, %p90
    %p92 = scmp.ne.s32.totalorder %s83, %s84
    %p93 = scmp.eq.s32.totalorder %s17, 0
    %p94 = por %p92, %p93
    %p95 = scmp.ne.s32.totalorder %s83, %s84
    %p96 = scmp.eq.s32.totalorder %s18, 1
    %p97 = por %p95, %p96
    %p99 = scmp.ne.s32.totalorder %s84, %s98
    %p100 = scmp.eq.s32.totalorder %s18, 0
    %p101 = por %p99, %p100
    %s102 = ssub.s32 %s20, %s27
    %p103 = scmp.eq.s32.totalorder %s102, 0
    %s105 = sadd.s32 %s104, 1
    %s106 = scalar_select %p103, %s104, %s105
    %p109 = pneg %p103
    %p110 = scmp.eq.s32.totalorder %s12, 1
    %p111 = por %p109, %p110
    %p112 = scmp.ne.s32.totalorder %s104, %s107
    %p113 = scmp.eq.s32.totalorder %s12, 0
    %p114 = por %p112, %p113
    %p115 = scmp.ne.s32.totalorder %s104, %s107
    %p116 = scmp.eq.s32.totalorder %s17, 1
    %p117 = por %p115, %p116
    %p118 = scmp.ne.s32.totalorder %s107, %s108
    %p119 = scmp.eq.s32.totalorder %s17, 0
    %p120 = por %p118, %p119
    %p121 = scmp.ne.s32.totalorder %s107, %s108
    %p122 = scmp.eq.s32.totalorder %s18, 1
    %p123 = por %p121, %p122
    %p125 = scmp.ne.s32.totalorder %s108, %s124
    %p126 = scmp.eq.s32.totalorder %s18, 0
    %p127 = por %p125, %p126
    %s128 = ssub.s32 %s19, %s31
    %s129 = ssub.s32 %s20, %s27
    %s130 = sor.u32 %s128, %s129
    %p131 = scmp.eq.s32.totalorder %s130, 0
    %s133 = sadd.s32 %s132, 1
    %s134 = scalar_select %p131, %s132, %s133
    %p137 = pneg %p131
    %p138 = scmp.eq.s32.totalorder %s12, 1
    %p139 = por %p137, %p138
    %p140 = scmp.ne.s32.totalorder %s132, %s135
    %p141 = scmp.eq.s32.totalorder %s12, 0
    %p142 = por %p140, %p141
    %p143 = scmp.ne.s32.totalorder %s132, %s135
    %p144 = scmp.eq.s32.totalorder %s17, 1
    %p145 = por %p143, %p144
    %p146 = scmp.ne.s32.totalorder %s135, %s136
    %p147 = scmp.eq.s32.totalorder %s17, 0
    %p148 = por %p146, %p147
    %p149 = scmp.ne.s32.totalorder %s135, %s136
    %p150 = scmp.eq.s32.totalorder %s18, 1
    %p151 = por %p149, %p150
    %p153 = scmp.ne.s32.totalorder %s136, %s152
    %p154 = scmp.eq.s32.totalorder %s18, 0
    %p155 = por %p153, %p154
    %s156 = sadd.s32 %s19, %s20
    %s157 = sadd.s32 %s31, %s27
    %s158 = ssub.s32 %s156, %s157
    %p159 = scmp.eq.s32.totalorder %s158, 0
    %s161 = sadd.s32 %s160, 1
    %s162 = scalar_select %p159, %s160, %s161
    %p165 = pneg %p159
    %p166 = scmp.eq.s32.totalorder %s12, 1
    %p167 = por %p165, %p166
    %p168 = scmp.ne.s32.totalorder %s160, %s163
    %p169 = scmp.eq.s32.totalorder %s12, 0
    %p170 = por %p168, %p169
    %p171 = scmp.ne.s32.totalorder %s160, %s163
    %p172 = scmp.eq.s32.totalorder %s17, 1
    %p173 = por %p171, %p172
    %p174 = scmp.ne.s32.totalorder %s163, %s164
    %p175 = scmp.eq.s32.totalorder %s17, 0
    %p176 = por %p174, %p175
    %p177 = scmp.ne.s32.totalorder %s163, %s164
    %p178 = scmp.eq.s32.totalorder %s18, 1
    %p179 = por %p177, %p178
    %p181 = scmp.ne.s32.totalorder %s164, %s180
    %p182 = scmp.eq.s32.totalorder %s18, 0
    %p183 = por %p181, %p182
    %p184 = scmp.le.s32.totalorder 1, %s12
    %p185 = scmp.lt.s32.totalorder %s12, 3
    %p186 = pnand %p184, %p185
    %p187 = pneg %p186
    // Predicated region
    $region9: #{residual_forward.4} parent=5 // pred_check
      _
    $region10: #{residual_forward.4} parent=5 // pred_check_branch
      %189 = sbr.rel (%p186) target = $region12
    $region11: #{residual_forward.4} parent=5 // pred_region
      %s190 = ssub.s32 %s12, 1
      // Predicated region
      $region13: #{residual_forward.4} parent=11 // pred_check
        %p191 = pneg %p73
      $region14: #{residual_forward.4} parent=11 // pred_check_branch
        %193 = sbr.rel (%p191) target = $region16
      $region15: #{residual_forward.4} parent=11 // pred_region
        _
      $region16: #{residual_forward.4} parent=11 // pred_fallthru
        _
      // Predicated region
      $region17: #{residual_forward.4} parent=11 // pred_check
        %p194 = pneg %p94
      $region18: #{residual_forward.4} parent=11 // pred_check_branch
        %196 = sbr.rel (%p194) target = $region20
      $region19: #{residual_forward.4} parent=11 // pred_region
        _
      $region20: #{residual_forward.4} parent=11 // pred_fallthru
        _
      // Predicated region
      $region21: #{residual_forward.4} parent=11 // pred_check
        %p197 = pneg %p120
      $region22: #{residual_forward.4} parent=11 // pred_check_branch
        %199 = sbr.rel (%p197) target = $region24
      $region23: #{residual_forward.4} parent=11 // pred_region
        %s200 = smul.u32 3, %s22
        %p201 = scmp.lt.s32.totalorder %s200, 2
        %s202 = scalar_select %p201, %s200, 2
        %s203 = scalar_lea.vmem %s3, %s202
        %s204 = smul.u32 3, %s22
      $region24: #{residual_forward.4} parent=11 // pred_fallthru
        _
    $region12: #{residual_forward.4} parent=5 // pred_fallthru
      _
    %p205 = scmp.lt.s32.totalorder %s12, 2
    // Predicated region
    $region25: #{residual_forward.4} parent=5 // pred_check
      %p206 = pneg %p205
    $region26: #{residual_forward.4} parent=5 // pred_check_branch
      %208 = sbr.rel (%p206) target = $region28
    $region27: #{residual_forward.4} parent=5 // pred_region
      // Predicated region
      $region29: #{residual_forward.4} parent=27 // pred_check
        %p209 = pneg %p46
      $region30: #{residual_forward.4} parent=27 // pred_check_branch
        %211 = sbr.rel (%p209) target = $region32
      $region31: #{residual_forward.4} parent=27 // pred_region
        %s212 = smul.u32 3, %s20
        %p213 = scmp.lt.s32.totalorder %s19, 1
        %s214 = scalar_select %p213, %s19, 1
        %p215 = scmp.lt.s32.totalorder %s212, 2
        %s216 = scalar_select %p215, %s212, 2
        %s217 = smul.addr %s214, 3
        %s218 = sadd.s32 %s216, %s217
        %s219 = smul.addr %s218, 8
        %s220 = scalar_lea.vmem %s0, %s219
        %s221 = smul.u32 3, %s20
      $region32: #{residual_forward.4} parent=27 // pred_fallthru
        _
    $region28: #{residual_forward.4} parent=5 // pred_fallthru
      _
    %p222 = scmp.le.s32.totalorder 1, %s12
    %p223 = scmp.lt.s32.totalorder %s12, 3
    %p224 = pnand %p222, %p223
    %p225 = pneg %p224
    // Predicated region
    $region33: #{residual_forward.4} parent=5 // pred_check
      _
    $region34: #{residual_forward.4} parent=5 // pred_check_branch
      %227 = sbr.rel (%p224) target = $region36
    $region35: #{residual_forward.4} parent=5 // pred_region
      %s228 = ssub.s32 %s12, 1
      %s229 = smul.u32 3, %s22
      %p230 = scmp.lt.s32.totalorder %s21, 1
      %s231 = scalar_select %p230, %s21, 1
      %p232 = scmp.lt.s32.totalorder %s229, 2
      %s233 = scalar_select %p232, %s229, 2
      %s234 = smul.addr %s231, 3
      %s235 = sadd.s32 %s233, %s234
      %s236 = smul.addr %s235, 8
      %s237 = scalar_lea.vmem %s0, %s236
      %p238 = pneg %p52
      %p239 = pneg %p49
      %p240 = pneg %p73
      %p241 = pneg %p70
      %p242 = pneg %p94
      %p243 = pneg %p91
      %s244 = smul.u32 3, %s22
      %p245 = scmp.lt.s32.totalorder %s244, 2
      %s246 = scalar_select %p245, %s244, 2
      %s247 = scalar_lea.vmem %s3, %s246
      %p248 = pneg %p120
      %p249 = pneg %p117
      %p250 = pneg %p148
      %p251 = pneg %p145
      %s252 = smul.u32 3, %s22
      %p253 = scmp.lt.s32.totalorder %s21, 1
      %s254 = scalar_select %p253, %s21, 1
      %p255 = scmp.lt.s32.totalorder %s252, 2
      %s256 = scalar_select %p255, %s252, 2
      %s257 = smul.addr %s254, 3
      %s258 = sadd.s32 %s256, %s257
      %s259 = smul.addr %s258, 8
      %s260 = scalar_lea.vmem %s4, %s259
      %p261 = pneg %p176
      %p262 = pneg %p173
      %s263 = sadd.s32 %s21, %s22
      %p264 = scmp.lt.s32.totalorder %s263, 1
      %s265 = scalar_select %p264, %s263, 1
      %s266 = smul.addr %s265, 2
      %s267 = smul.addr %s266, 8
      %s268 = scalar_lea.vmem %s5, %s267
      %s269 = smul.u32 3, %s22
      %p270 = scmp.lt.s32.totalorder %s21, 1
      %s271 = scalar_select %p270, %s21, 1
      %p272 = scmp.lt.s32.totalorder %s269, 2
      %s273 = scalar_select %p272, %s269, 2
      %s274 = smul.addr %s271, 3
      %s275 = sadd.s32 %s273, %s274
      %s276 = smul.addr %s275, 8
      %s277 = scalar_lea.vmem %s0, %s276
      %s278 = smul.u32 3, %s22
      %s279 = smul.u32 3, %s22
      %p280 = scmp.lt.s32.totalorder %s279, 2
      %s281 = scalar_select %p280, %s279, 2
      %s282 = scalar_lea.vmem %s3, %s281
      %s283 = smul.u32 3, %s22
      %s284 = smul.u32 3, %s22
      %p285 = scmp.lt.s32.totalorder %s21, 1
      %s286 = scalar_select %p285, %s21, 1
      %p287 = scmp.lt.s32.totalorder %s284, 2
      %s288 = scalar_select %p287, %s284, 2
      %s289 = smul.addr %s286, 3
      %s290 = sadd.s32 %s288, %s289
      %s291 = smul.addr %s290, 8
      %s292 = scalar_lea.vmem %s4, %s291
      %s293 = smul.u32 3, %s22
      %s294 = sadd.s32 %s21, %s22
      %p295 = scmp.lt.s32.totalorder %s294, 1
      %s296 = scalar_select %p295, %s294, 1
      %s297 = smul.addr %s296, 2
      %s298 = smul.addr %s297, 8
      %s299 = scalar_lea.vmem %s5, %s298
      %s300 = sadd.s32 %s21, %s22
      %v301 = vld [vmem:[%s277] sm:$0xff]
      %v302 = vld [vmem:[%s277 + $0x8] sm:$0xff]
      %v303 = vld [vmem:[%s277 + $0x10] sm:$0xff]
      %v304 = vld [vmem:[%s1] sm:$0xff]
      %306 = vset.pattern.permute.xlu0 0
      %307 = vperm.xlu0 %306, %v304
      %v308 = vpop.permute.xlu0 %307
      %v310 = vmul.f32 %v301, %v308
      %v311 = vmul.f32 %v302, %v308
      %v312 = vmul.f32 %v303, %v308
      %s313 = scalar_lea.vmem %s1, 8
      %v314 = vld [vmem:[%s313] sm:$0xff]
      %316 = vset.pattern.permute.xlu0 0
      %317 = vperm.xlu0 %316, %v314
      %v318 = vpop.permute.xlu0 %317
      %v320 = vadd.f32 %v310, %v318
      %v321 = vadd.f32 %v311, %v318
      %v322 = vadd.f32 %v312, %v318
      %v323 = vmax.f32 %v320, 0.0
      %v324 = vmax.f32 %v321, 0.0
      %v325 = vmax.f32 %v322, 0.0
      %v326 = vld [vmem:[%s2] sm:$0xff]
      %vm327 = vcmask 64512
      %v329 = vsel %vm327, %v326, 0
      %331 = vmatprep.subr.mxu0 %v324
      %332 = vmatpush1.msra.mxu0 %v323
      %333 = vmatprep.subr.mxu0 0.0
      %334 = vmatpush1.msra.mxu0 0.0
      %335 = vmatprep.subr.mxu0 0.0
      %336 = vmatpush1.msra.mxu0 0.0
      %337 = vmatprep.subr.mxu0 0.0
      %338 = vmatpush1.msra.mxu0 0.0
      %339 = vmatprep.subr.mxu0 0.0
      %340 = vmatpush1.msra.mxu0 0.0
      %341 = vmatprep.subr.mxu0 0.0
      %342 = vmatpush1.msra.mxu0 0.0
      %343 = vmatprep.subr.mxu0 0.0
      %344 = vmatpush1.msra.mxu0 0.0
      %345 = vmatprep.subr.mxu0 0.0
      %346 = vmatpush1.msra.mxu0 0.0
      %347 = vmatprep.subr.mxu0 0.0
      %348 = vmatpush1.msra.mxu0 0.0
      %349 = vmatprep.subr.mxu0 0.0
      %350 = vmatpush1.msra.mxu0 0.0
      %351 = vmatprep.subr.mxu0 0.0
      %352 = vmatpush1.msra.mxu0 0.0
      %353 = vmatprep.subr.mxu0 0.0
      %354 = vmatpush1.msra.mxu0 0.0
      %355 = vmatprep.subr.mxu0 0.0
      %356 = vmatpush1.msra.mxu0 0.0
      %357 = vmatprep.subr.mxu0 0.0
      %358 = vmatpush1.msra.mxu0 0.0
      %359 = vmatprep.subr.mxu0 0.0
      %360 = vmatpush1.msra.mxu0 0.0
      %361 = vmatprep.subr.mxu0 0.0
      %362 = vmatpush1.msra.mxu0 0.0
      %363 = vmatprep.subr.mxu0 0.0
      %364 = vmatpush1.msra.mxu0 0.0
      %365 = vmatprep.subr.mxu0 0.0
      %366 = vmatpush1.msra.mxu0 0.0
      %367 = vmatprep.subr.mxu0 0.0
      %368 = vmatpush1.msra.mxu0 0.0
      %369 = vmatprep.subr.mxu0 0.0
      %370 = vmatpush1.msra.mxu0 0.0
      %371 = vmatprep.subr.mxu0 0.0
      %372 = vmatpush1.msra.mxu0 0.0
      %373 = vmatprep.subr.mxu0 0.0
      %374 = vmatpush1.msra.mxu0 0.0
      %375 = vmatprep.subr.mxu0 0.0
      %376 = vmatpush1.msra.mxu0 0.0
      %377 = vmatprep.subr.mxu0 0.0
      %378 = vmatpush1.msra.mxu0 0.0
      %379 = vmatprep.subr.mxu0 0.0
      %380 = vmatpush1.msra.mxu0 0.0
      %381 = vmatprep.subr.mxu0 0.0
      %382 = vmatpush1.msra.mxu0 0.0
      %383 = vmatprep.subr.mxu0 0.0
      %384 = vmatpush1.msra.mxu0 0.0
      %385 = vmatprep.subr.mxu0 0.0
      %386 = vmatpush1.msra.mxu0 0.0
      %387 = vmatprep.subr.mxu0 0.0
      %388 = vmatpush1.msra.mxu0 0.0
      %389 = vmatprep.subr.mxu0 0.0
      %390 = vmatpush1.msra.mxu0 0.0
      %391 = vmatprep.subr.mxu0 0.0
      %392 = vmatpush1.msra.mxu0 0.0
      %393 = vmatprep.subr.mxu0 0.0
      %394 = vmatpush1.msra.mxu0 0.0
      %395 = vmatprep.mubr.f32.mxu0 0.0
      %396 = vmatmul.mubr.f32.gmra.mrb[0].mxu0 %v329
      %v397 = vpop.f32.mrb[0].mxu0
      %v398 = vadd.f32 0.0, %v397
      %v399 = vpop.f32.mrb[0].mxu0
      %v400 = vadd.f32 0.0, %v399
      %401 = vdwg.mxu0
      %402 = vmatprep.subr.mxu0 0.0
      %403 = vmatpush1.msra.mxu0 %v325
      %404 = vmatprep.subr.mxu0 0.0
      %405 = vmatpush1.msra.mxu0 0.0
      %406 = vmatprep.subr.mxu0 0.0
      %407 = vmatpush1.msra.mxu0 0.0
      %408 = vmatprep.subr.mxu0 0.0
      %409 = vmatpush1.msra.mxu0 0.0
      %410 = vmatprep.subr.mxu0 0.0
      %411 = vmatpush1.msra.mxu0 0.0
      %412 = vmatprep.subr.mxu0 0.0
      %413 = vmatpush1.msra.mxu0 0.0
      %414 = vmatprep.subr.mxu0 0.0
      %415 = vmatpush1.msra.mxu0 0.0
      %416 = vmatprep.subr.mxu0 0.0
      %417 = vmatpush1.msra.mxu0 0.0
      %418 = vmatprep.subr.mxu0 0.0
      %419 = vmatpush1.msra.mxu0 0.0
      %420 = vmatprep.subr.mxu0 0.0
      %421 = vmatpush1.msra.mxu0 0.0
      %422 = vmatprep.subr.mxu0 0.0
      %423 = vmatpush1.msra.mxu0 0.0
      %424 = vmatprep.subr.mxu0 0.0
      %425 = vmatpush1.msra.mxu0 0.0
      %426 = vmatprep.subr.mxu0 0.0
      %427 = vmatpush1.msra.mxu0 0.0
      %428 = vmatprep.subr.mxu0 0.0
      %429 = vmatpush1.msra.mxu0 0.0
      %430 = vmatprep.subr.mxu0 0.0
      %431 = vmatpush1.msra.mxu0 0.0
      %432 = vmatprep.subr.mxu0 0.0
      %433 = vmatpush1.msra.mxu0 0.0
      %434 = vmatprep.subr.mxu0 0.0
      %435 = vmatpush1.msra.mxu0 0.0
      %436 = vmatprep.subr.mxu0 0.0
      %437 = vmatpush1.msra.mxu0 0.0
      %438 = vmatprep.subr.mxu0 0.0
      %439 = vmatpush1.msra.mxu0 0.0
      %440 = vmatprep.subr.mxu0 0.0
      %441 = vmatpush1.msra.mxu0 0.0
      %442 = vmatprep.subr.mxu0 0.0
      %443 = vmatpush1.msra.mxu0 0.0
      %444 = vmatprep.subr.mxu0 0.0
      %445 = vmatpush1.msra.mxu0 0.0
      %446 = vmatprep.subr.mxu0 0.0
      %447 = vmatpush1.msra.mxu0 0.0
      %448 = vmatprep.subr.mxu0 0.0
      %449 = vmatpush1.msra.mxu0 0.0
      %450 = vmatprep.subr.mxu0 0.0
      %451 = vmatpush1.msra.mxu0 0.0
      %452 = vmatprep.subr.mxu0 0.0
      %453 = vmatpush1.msra.mxu0 0.0
      %454 = vmatprep.subr.mxu0 0.0
      %455 = vmatpush1.msra.mxu0 0.0
      %456 = vmatprep.subr.mxu0 0.0
      %457 = vmatpush1.msra.mxu0 0.0
      %458 = vmatprep.subr.mxu0 0.0
      %459 = vmatpush1.msra.mxu0 0.0
      %460 = vmatprep.subr.mxu0 0.0
      %461 = vmatpush1.msra.mxu0 0.0
      %462 = vmatprep.subr.mxu0 0.0
      %463 = vmatpush1.msra.mxu0 0.0
      %464 = vmatprep.subr.mxu0 0.0
      %465 = vmatpush1.msra.mxu0 0.0
      %466 = vmatprep.mubr.f32.mxu0 0.0
      %467 = vmatmul.mubr.f32.gmra.mrb[0].mxu0 %v329
      %v468 = vpop.f32.mrb[0].mxu0
      %v469 = vadd.f32 0.0, %v468
      %v470 = vpop.f32.mrb[0].mxu0
      %471 = vdwg.mxu0
      %472 = vst [vmem:[%s292] sm:$0xff] %v398
      %473 = vst [vmem:[%s292 + $0x8] sm:$0xff] %v400
      %vm474 = vcmask 261120
      %475 = vst.msk [vmem:[%s292 + $0x10] sm:$0xff] %vm474, %v469
      %v476 = vld [vmem:[%s282] sm:$0x7]
      %v478 = vlaneseq
      %v479 = vshrl.u32 %v478, 7
      %v480 = vsub.s32 0, %v479
      %v481 = vrot.slane %v476, %v480
      %v482 = vlaneseq
      %v483 = vshrl.u32 %v482, 7
      %v484 = vsub.s32 1, %v483
      %v485 = vrot.slane %v476, %v484
      %v486 = vlaneseq
      %v487 = vshrl.u32 %v486, 7
      %v488 = vsub.s32 2, %v487
      %v489 = vrot.slane %v476, %v488
      %v493 = vmul.f32 %v398, %v481
      %v494 = vmul.f32 %v400, %v485
      %v495 = vmul.f32 %v469, %v489
      %v496 = vadd.f32 %v493, %v494
      %v497 = vsel %vm474, %v495, 0.0
      %v498 = vadd.f32 %v496, %v497
      %499 = vadd.xlane.f32.xlu0 %v498
      %v500 = vpop.xlane.xlu0 %499
      %v501 = vmul.f32 %v493, %v493
      %v502 = vmul.f32 %v494, %v494
      %v503 = vmul.f32 %v495, %v495
      %v504 = vadd.f32 %v501, %v502
      %v505 = vsel %vm474, %v503, 0.0
      %v506 = vadd.f32 %v504, %v505
      %507 = vadd.xlane.f32.xlu0 %v506
      %v508 = vpop.xlane.xlu0 %507
      %vm509 = vcmask 7168
      %510 = vst.msk [vmem:[%s299] sm:$0xff] %vm509, %v500
      %511 = vst.msk [vmem:[%s299 + $0x8] sm:$0xff] %vm509, %v508
      %s512 = smul.u32 3, %s22
      %p513 = scmp.lt.s32.totalorder %s21, 1
      %s514 = scalar_select %p513, %s21, 1
      %p515 = scmp.lt.s32.totalorder %s512, 2
      %s516 = scalar_select %p515, %s512, 2
      %s517 = smul.addr %s514, 3
      %s518 = sadd.s32 %s516, %s517
      %s519 = smul.addr %s518, 8
      %s520 = scalar_lea.vmem %s4, %s519
      %s521 = sadd.s32 %s21, %s22
      %p522 = scmp.lt.s32.totalorder %s521, 1
      %s523 = scalar_select %p522, %s521, 1
      %s524 = smul.addr %s523, 2
      %s525 = smul.addr %s524, 8
      %s526 = scalar_lea.vmem %s5, %s525
      // Predicated region
      $region37: #{residual_forward.4} parent=35 // pred_check
        %p527 = pneg %p145
      $region38: #{residual_forward.4} parent=35 // pred_check_branch
        %529 = sbr.rel (%p527) target = $region40
      $region39: #{residual_forward.4} parent=35 // pred_region
        %s530 = smul.u32 3, %s22
      $region40: #{residual_forward.4} parent=35 // pred_fallthru
        _
      // Predicated region
      $region41: #{residual_forward.4} parent=35 // pred_check
        %p531 = pneg %p173
      $region42: #{residual_forward.4} parent=35 // pred_check_branch
        %533 = sbr.rel (%p531) target = $region44
      $region43: #{residual_forward.4} parent=35 // pred_region
        %s534 = sadd.s32 %s21, %s22
      $region44: #{residual_forward.4} parent=35 // pred_fallthru
        _
    $region36: #{residual_forward.4} parent=5 // pred_fallthru
      _
    %p535 = scmp.le.s32.totalorder 2, %s12
    // Predicated region
    $region45: #{residual_forward.4} parent=5 // pred_check
      %p536 = pneg %p535
    $region46: #{residual_forward.4} parent=5 // pred_check_branch
      %538 = sbr.rel (%p536) target = $region48
    $region47: #{residual_forward.4} parent=5 // pred_region
      %s539 = ssub.s32 %s12, 2
      // Predicated region
      $region49: #{residual_forward.4} parent=47 // pred_check
        %p540 = pneg %p151
      $region50: #{residual_forward.4} parent=47 // pred_check_branch
        %542 = sbr.rel (%p540) target = $region52
      $region51: #{residual_forward.4} parent=47 // pred_region
        %s543 = smul.u32 3, %s24
        %p544 = scmp.lt.s32.totalorder %s23, 1
        %s545 = scalar_select %p544, %s23, 1
        %p546 = scmp.lt.s32.totalorder %s543, 2
        %s547 = scalar_select %p546, %s543, 2
        %s548 = smul.addr %s545, 3
        %s549 = sadd.s32 %s547, %s548
        %s550 = smul.addr %s549, 8
        %s551 = scalar_lea.vmem %s4, %s550
      $region52: #{residual_forward.4} parent=47 // pred_fallthru
        _
      // Predicated region
      $region53: #{residual_forward.4} parent=47 // pred_check
        %p552 = pneg %p179
      $region54: #{residual_forward.4} parent=47 // pred_check_branch
        %554 = sbr.rel (%p552) target = $region56
      $region55: #{residual_forward.4} parent=47 // pred_region
        %s555 = sadd.s32 %s23, %s24
        %p556 = scmp.lt.s32.totalorder %s555, 1
        %s557 = scalar_select %p556, %s555, 1
        %s558 = smul.addr %s557, 2
        %s559 = smul.addr %s558, 8
        %s560 = scalar_lea.vmem %s5, %s559
      $region56: #{residual_forward.4} parent=47 // pred_fallthru
        _
    $region48: #{residual_forward.4} parent=5 // pred_fallthru
      _
  $region6: #{residual_forward.4} parent=0 // loop_footer
    %s16 = sadd.s32 1, %s12
  $region7: #{residual_forward.4} parent=0 // loop_footer_branch
    %11 = sbr.rel target = $region3
  $region8: #{residual_forward.4} parent=0 // loop_exit
    _

// kernel: residual_forward.3
$region0: #{residual_forward.3}
  #allocation0 [shape = 'u32[]', space=smem, size = 0x4, offset = 0x4, fixed_abs, tag = 'smem constant byte address 0x4 - core index']
  #allocation1 [shape = 'u32[144,128]{1,0:T(1,128)}', space=vmem, size = 0x12000, scoped, tag = 'internal scratch']
  %s0 = inlined_call_operand.vmem [shape: f32[2,8,342], index: 0, kind: input, shape index: {}]
  %s1 = inlined_call_operand.vmem [shape: f32[8,72], index: 1, kind: input, shape index: {}]
  %s2 = inlined_call_operand.vmem [shape: f32[1,288], index: 2, kind: input, shape index: {}]
  %s3 = inlined_call_operand.vmem [shape: f32[2,8,288], index: 3, kind: output, shape index: {0}]
  %s4 = inlined_call_operand.vmem [shape: f32[2,2,8,1], index: 4, kind: output, shape index: {1}]
  %5 = xla_tuple %s3, %s4
  %s6 = sld [smem:[#allocation0]]
  $region53: #{residual_forward.3} parent=0
    _
  %s8 = ssub.s32 1, %s6
  %s9 = scalar_select 0, %s8, %s6
  loop: start=0, step=1, limit=4
  $region2: #{residual_forward.3} parent=0 // loop_pre_header
    _
  $region3: #{residual_forward.3} parent=0 // loop_header
    %s11 = sphi 0, %s15
    %p12 = scmp.ge.s32.totalorder %s11, 4
    %s21 = sphi 0, %s23
    %s24 = sphi 0, %s21
    %s25 = sphi 0, %s24
    %s41 = sphi 0, %s25
    %s45 = sphi 0, %s45
    %s47 = sphi 0, %s45
    %s48 = sphi 0, %s47
    %s62 = sphi 0, %s48
    %s66 = sphi 0, %s66
    %s68 = sphi 0, %s66
    %s69 = sphi 0, %s68
    %s83 = sphi 0, %s69
    %s89 = sphi 0, %s91
    %s92 = sphi 0, %s89
    %s93 = sphi 0, %s92
    %s109 = sphi 0, %s93
    %s115 = sphi 0, %s117
    %s118 = sphi 0, %s115
    %s119 = sphi 0, %s118
    %s135 = sphi 0, %s119
  $region4: #{residual_forward.3} parent=0 // loop_header_branch
    %14 = sbr.rel (%p12) target = $region8
  $region5: #{residual_forward.3} parent=0 // loop_body
    %s16 = ssub.s32 %s11, 1
    %s17 = ssub.s32 %s11, 2
    %s18 = sadd.s32 %s11, 1
    %s19 = ssub.s32 %s11, %s18
    %p20 = scmp.eq.s32.totalorder %s19, 0
    %s22 = sadd.s32 %s21, 1
    %s23 = scalar_select %p20, %s21, %s22
    %p26 = pneg %p20
    %p27 = scmp.eq.s32.totalorder %s11, 1
    %p28 = por %p26, %p27
    %p29 = scmp.ne.s32.totalorder %s21, %s24
    %p30 = scmp.eq.s32.totalorder %s11, 0
    %p31 = por %p29, %p30
    %p32 = scmp.ne.s32.totalorder %s21, %s24
    %p33 = scmp.eq.s32.totalorder %s16, 1
    %p34 = por %p32, %p33
    %p35 = scmp.ne.s32.totalorder %s24, %s25
    %p36 = scmp.eq.s32.totalorder %s16, 0
    %p37 = por %p35, %p36
    %p38 = scmp.ne.s32.totalorder %s24, %s25
    %p39 = scmp.eq.s32.totalorder %s17, 1
    %p40 = por %p38, %p39
    %p42 = scmp.ne.s32.totalorder %s25, %s41
    %p43 = scmp.eq.s32.totalorder %s17, 0
    %p44 = por %p42, %p43
    %s46 = sadd.s32 %s45, 1
    %p49 = scmp.eq.s32.totalorder %s11, 1
    %p50 = scmp.ne.s32.totalorder %s45, %s47
    %p51 = scmp.eq.s32.totalorder %s11, 0
    %p52 = por %p50, %p51
    %p53 = scmp.ne.s32.totalorder %s45, %s47
    %p54 = scmp.eq.s32.totalorder %s16, 1
    %p55 = por %p53, %p54
    %p56 = scmp.ne.s32.totalorder %s47, %s48
    %p57 = scmp.eq.s32.totalorder %s16, 0
    %p58 = por %p56, %p57
    %p59 = scmp.ne.s32.totalorder %s47, %s48
    %p60 = scmp.eq.s32.totalorder %s17, 1
    %p61 = por %p59, %p60
    %p63 = scmp.ne.s32.totalorder %s48, %s62
    %p64 = scmp.eq.s32.totalorder %s17, 0
    %p65 = por %p63, %p64
    %s67 = sadd.s32 %s66, 1
    %p70 = scmp.eq.s32.totalorder %s11, 1
    %p71 = scmp.ne.s32.totalorder %s66, %s68
    %p72 = scmp.eq.s32.totalorder %s11, 0
    %p73 = por %p71, %p72
    %p74 = scmp.ne.s32.totalorder %s66, %s68
    %p75 = scmp.eq.s32.totalorder %s16, 1
    %p76 = por %p74, %p75
    %p77 = scmp.ne.s32.totalorder %s68, %s69
    %p78 = scmp.eq.s32.totalorder %s16, 0
    %p79 = por %p77, %p78
    %p80 = scmp.ne.s32.totalorder %s68, %s69
    %p81 = scmp.eq.s32.totalorder %s17, 1
    %p82 = por %p80, %p81
    %p84 = scmp.ne.s32.totalorder %s69, %s83
    %p85 = scmp.eq.s32.totalorder %s17, 0
    %p86 = por %p84, %p85
    %s87 = ssub.s32 %s11, %s18
    %p88 = scmp.eq.s32.totalorder %s87, 0
    %s90 = sadd.s32 %s89, 1
    %s91 = scalar_select %p88, %s89, %s90
    %p94 = pneg %p88
    %p95 = scmp.eq.s32.totalorder %s11, 1
    %p96 = por %p94, %p95
    %p97 = scmp.ne.s32.totalorder %s89, %s92
    %p98 = scmp.eq.s32.totalorder %s11, 0
    %p99 = por %p97, %p98
    %p100 = scmp.ne.s32.totalorder %s89, %s92
    %p101 = scmp.eq.s32.totalorder %s16, 1
    %p102 = por %p100, %p101
    %p103 = scmp.ne.s32.totalorder %s92, %s93
    %p104 = scmp.eq.s32.totalorder %s16, 0
    %p105 = por %p103, %p104
    %p106 = scmp.ne.s32.totalorder %s92, %s93
    %p107 = scmp.eq.s32.totalorder %s17, 1
    %p108 = por %p106, %p107
    %p110 = scmp.ne.s32.totalorder %s93, %s109
    %p111 = scmp.eq.s32.totalorder %s17, 0
    %p112 = por %p110, %p111
    %s113 = ssub.s32 %s11, %s18
    %p114 = scmp.eq.s32.totalorder %s113, 0
    %s116 = sadd.s32 %s115, 1
    %s117 = scalar_select %p114, %s115, %s116
    %p120 = pneg %p114
    %p121 = scmp.eq.s32.totalorder %s11, 1
    %p122 = por %p120, %p121
    %p123 = scmp.ne.s32.totalorder %s115, %s118
    %p124 = scmp.eq.s32.totalorder %s11, 0
    %p125 = por %p123, %p124
    %p126 = scmp.ne.s32.totalorder %s115, %s118
    %p127 = scmp.eq.s32.totalorder %s16, 1
    %p128 = por %p126, %p127
    %p129 = scmp.ne.s32.totalorder %s118, %s119
    %p130 = scmp.eq.s32.totalorder %s16, 0
    %p131 = por %p129, %p130
    %p132 = scmp.ne.s32.totalorder %s118, %s119
    %p133 = scmp.eq.s32.totalorder %s17, 1
    %p134 = por %p132, %p133
    %p136 = scmp.ne.s32.totalorder %s119, %s135
    %p137 = scmp.eq.s32.totalorder %s17, 0
    %p138 = por %p136, %p137
    %p139 = scmp.le.s32.totalorder 1, %s11
    %p140 = scmp.lt.s32.totalorder %s11, 3
    %p141 = pnand %p139, %p140
    %p142 = pneg %p141
    // Predicated region
    $region9: #{residual_forward.3} parent=5 // pred_check
      _
    $region10: #{residual_forward.3} parent=5 // pred_check_branch
      %144 = sbr.rel (%p141) target = $region12
    $region11: #{residual_forward.3} parent=5 // pred_region
      %s145 = ssub.s32 %s11, 1
      // Predicated region
      $region13: #{residual_forward.3} parent=11 // pred_check
        %p146 = pneg %p58
      $region14: #{residual_forward.3} parent=11 // pred_check_branch
        %148 = sbr.rel (%p146) target = $region16
      $region15: #{residual_forward.3} parent=11 // pred_region
        _
      $region16: #{residual_forward.3} parent=11 // pred_fallthru
        _
      // Predicated region
      $region17: #{residual_forward.3} parent=11 // pred_check
        %p149 = pneg %p79
      $region18: #{residual_forward.3} parent=11 // pred_check_branch
        %151 = sbr.rel (%p149) target = $region20
      $region19: #{residual_forward.3} parent=11 // pred_region
        _
      $region20: #{residual_forward.3} parent=11 // pred_fallthru
        _
    $region12: #{residual_forward.3} parent=5 // pred_fallthru
      _
    %p152 = scmp.lt.s32.totalorder %s11, 2
    // Predicated region
    $region21: #{residual_forward.3} parent=5 // pred_check
      %p153 = pneg %p152
    $region22: #{residual_forward.3} parent=5 // pred_check_branch
      %155 = sbr.rel (%p153) target = $region24
    $region23: #{residual_forward.3} parent=5 // pred_region
      // Predicated region
      $region25: #{residual_forward.3} parent=23 // pred_check
        %p156 = pneg %p31
      $region26: #{residual_forward.3} parent=23 // pred_check_branch
        %158 = sbr.rel (%p156) target = $region28
      $region27: #{residual_forward.3} parent=23 // pred_region
        %p159 = scmp.lt.s32.totalorder %s11, 1
        %s160 = scalar_select %p159, %s11, 1
        %s161 = smul.addr %s160, 3
        %s162 = smul.addr %s161, 8
        %s163 = scalar_lea.vmem %s0, %s162
      $region28: #{residual_forward.3} parent=23 // pred_fallthru
        _
    $region24: #{residual_forward.3} parent=5 // pred_fallthru
      _
    %p164 = scmp.le.s32.totalorder 1, %s11
    %p165 = scmp.lt.s32.totalorder %s11, 3
    %p166 = pnand %p164, %p165
    %p167 = pneg %p166
    // Predicated region
    $region29: #{residual_forward.3} parent=5 // pred_check
      _
    $region30: #{residual_forward.3} parent=5 // pred_check_branch
      %169 = sbr.rel (%p166) target = $region32
    $region31: #{residual_forward.3} parent=5 // pred_region
      %s170 = ssub.s32 %s11, 1
      %p171 = scmp.lt.s32.totalorder %s16, 1
      %s172 = scalar_select %p171, %s16, 1
      %s173 = smul.addr %s172, 3
      %s174 = smul.addr %s173, 8
      %s175 = scalar_lea.vmem %s0, %s174
      %p176 = pneg %p37
      %p177 = pneg %p34
      %p178 = pneg %p58
      %p179 = pneg %p55
      %p180 = pneg %p79
      %p181 = pneg %p76
      %p182 = pneg %p105
      %p183 = pneg %p102
      %p184 = scmp.lt.s32.totalorder %s16, 1
      %s185 = scalar_select %p184, %s16, 1
      %s186 = smul.addr %s185, 3
      %s187 = smul.addr %s186, 8
      %s188 = scalar_lea.vmem %s3, %s187
      %p189 = pneg %p131
      %p190 = pneg %p128
      %p191 = scmp.lt.s32.totalorder %s16, 1
      %s192 = scalar_select %p191, %s16, 1
      %s193 = smul.addr %s192, 2
      %s194 = smul.addr %s193, 8
      %s195 = scalar_lea.vmem %s4, %s194
      %p196 = scmp.lt.s32.totalorder %s16, 1
      %s197 = scalar_select %p196, %s16, 1
      %s198 = smul.addr %s197, 3
      %s199 = smul.addr %s198, 8
      %s200 = scalar_lea.vmem %s0, %s199
      %p201 = scmp.lt.s32.totalorder %s16, 1
      %s202 = scalar_select %p201, %s16, 1
      %s203 = smul.addr %s202, 3
      %s204 = smul.addr %s203, 8
      %s205 = scalar_lea.vmem %s3, %s204
      %p206 = scmp.lt.s32.totalorder %s16, 1
      %s207 = scalar_select %p206, %s16, 1
      %s208 = smul.addr %s207, 2
      %s209 = smul.addr %s208, 8
      %s210 = scalar_lea.vmem %s4, %s209
      %v211 = vld [vmem:[%s200] sm:$0xff]
      %v212 = vld [vmem:[%s200 + $0x8] sm:$0xff]
      %v213 = vld [vmem:[%s200 + $0x10] sm:$0xff]
      %v214 = vmax.f32 %v211, 0.0
      %v215 = vmax.f32 %v212, 0.0
      %v216 = vmax.f32 %v213, 0.0
      %220 = vrot.lane.b32.xlu0 %v214, 127
      %v221 = vpop.permute.xlu0 %220
      %222 = vrot.lane.b32.xlu0 %v215, 127
      %v223 = vpop.permute.xlu0 %222
      %224 = vrot.lane.b32.xlu0 %v216, 127
      %v225 = vpop.permute.xlu0 %224
      %vm226 = vcmask 1039360
      %v227 = vsel %vm226, %v221, %v223
      %v228 = vsel %vm226, %v223, %v225
      %232 = vrot.lane.b32.xlu0 %v214, 126
      %v233 = vpop.permute.xlu0 %232
      %234 = vrot.lane.b32.xlu0 %v215, 126
      %v235 = vpop.permute.xlu0 %234
      %236 = vrot.lane.b32.xlu0 %v216, 126
      %v237 = vpop.permute.xlu0 %236
      %vm238 = vcmask 1031168
      %v239 = vsel %vm238, %v233, %v235
      %v240 = vsel %vm238, %v235, %v237
      %244 = vrot.lane.b32.xlu0 %v214, 110
      %v245 = vpop.permute.xlu0 %244
      %246 = vrot.lane.b32.xlu0 %v215, 110
      %v247 = vpop.permute.xlu0 %246
      %248 = vrot.lane.b32.xlu0 %v216, 110
      %v249 = vpop.permute.xlu0 %248
      %vm250 = vcmask 900096
      %v251 = vsel %vm250, %v245, %v247
      %v252 = vsel %vm250, %v247, %v249
      %256 = vrot.lane.b32.xlu0 %v214, 109
      %v257 = vpop.permute.xlu0 %256
      %258 = vrot.lane.b32.xlu0 %v215, 109
      %v259 = vpop.permute.xlu0 %258
      %260 = vrot.lane.b32.xlu0 %v216, 109
      %v261 = vpop.permute.xlu0 %260
      %vm262 = vcmask 891904
      %v263 = vsel %vm262, %v257, %v259
      %v264 = vsel %vm262, %v259, %v261
      %268 = vrot.lane.b32.xlu0 %v214, 108
      %v269 = vpop.permute.xlu0 %268
      %270 = vrot.lane.b32.xlu0 %v215, 108
      %v271 = vpop.permute.xlu0 %270
      %272 = vrot.lane.b32.xlu0 %v216, 108
      %v273 = vpop.permute.xlu0 %272
      %vm274 = vcmask 883712
      %v275 = vsel %vm274, %v269, %v271
      %v276 = vsel %vm274, %v271, %v273
      %280 = vrot.lane.b32.xlu0 %v214, 92
      %v281 = vpop.permute.xlu0 %280
      %282 = vrot.lane.b32.xlu0 %v215, 92
      %v283 = vpop.permute.xlu0 %282
      %284 = vrot.lane.b32.xlu0 %v216, 92
      %v285 = vpop.permute.xlu0 %284
      %vm286 = vcmask 752640
      %v287 = vsel %vm286, %v281, %v283
      %v288 = vsel %vm286, %v283, %v285
      %292 = vrot.lane.b32.xlu0 %v214, 91
      %v293 = vpop.permute.xlu0 %292
      %294 = vrot.lane.b32.xlu0 %v215, 91
      %v295 = vpop.permute.xlu0 %294
      %296 = vrot.lane.b32.xlu0 %v216, 91
      %v297 = vpop.permute.xlu0 %296
      %vm298 = vcmask 744448
      %v299 = vsel %vm298, %v293, %v295
      %v300 = vsel %vm298, %v295, %v297
      %304 = vrot.lane.b32.xlu0 %v214, 90
      %v305 = vpop.permute.xlu0 %304
      %306 = vrot.lane.b32.xlu0 %v215, 90
      %v307 = vpop.permute.xlu0 %306
      %308 = vrot.lane.b32.xlu0 %v216, 90
      %v309 = vpop.permute.xlu0 %308
      %vm310 = vcmask 736256
      %v311 = vsel %vm310, %v305, %v307
      %v312 = vsel %vm310, %v307, %v309
      %v316 = vld [vmem:[%s1] sm:$0xff]
      %vm317 = vcmask 588800
      %v319 = vsel %vm317, %v316, 0
      %321 = vmatprep.subr.mxu0 %v215
      %322 = vmatpush1.msra.mxu0 %v214
      %323 = vmatprep.subr.mxu0 %v228
      %324 = vmatpush1.msra.mxu0 %v227
      %325 = vmatprep.subr.mxu0 %v240
      %326 = vmatpush1.msra.mxu0 %v239
      %327 = vmatprep.subr.mxu0 %v252
      %328 = vmatpush1.msra.mxu0 %v251
      %329 = vmatprep.subr.mxu0 %v264
      %330 = vmatpush1.msra.mxu0 %v263
      %331 = vmatprep.subr.mxu0 %v276
      %332 = vmatpush1.msra.mxu0 %v275
      %333 = vmatprep.subr.mxu0 %v288
      %334 = vmatpush1.msra.mxu0 %v287
      %335 = vmatprep.subr.mxu0 %v300
      %336 = vmatpush1.msra.mxu0 %v299
      %337 = vmatprep.subr.mxu0 %v312
      %338 = vmatpush1.msra.mxu0 %v311
      %339 = vmatprep.subr.mxu0 0.0
      %340 = vmatpush1.msra.mxu0 0.0
      %341 = vmatprep.subr.mxu0 0.0
      %342 = vmatpush1.msra.mxu0 0.0
      %343 = vmatprep.subr.mxu0 0.0
      %344 = vmatpush1.msra.mxu0 0.0
      %345 = vmatprep.subr.mxu0 0.0
      %346 = vmatpush1.msra.mxu0 0.0
      %347 = vmatprep.subr.mxu0 0.0
      %348 = vmatpush1.msra.mxu0 0.0
      %349 = vmatprep.subr.mxu0 0.0
      %350 = vmatpush1.msra.mxu0 0.0
      %351 = vmatprep.subr.mxu0 0.0
      %352 = vmatpush1.msra.mxu0 0.0
      %353 = vmatprep.subr.mxu0 0.0
      %354 = vmatpush1.msra.mxu0 0.0
      %355 = vmatprep.subr.mxu0 0.0
      %356 = vmatpush1.msra.mxu0 0.0
      %357 = vmatprep.subr.mxu0 0.0
      %358 = vmatpush1.msra.mxu0 0.0
      %359 = vmatprep.subr.mxu0 0.0
      %360 = vmatpush1.msra.mxu0 0.0
      %361 = vmatprep.subr.mxu0 0.0
      %362 = vmatpush1.msra.mxu0 0.0
      %363 = vmatprep.subr.mxu0 0.0
      %364 = vmatpush1.msra.mxu0 0.0
      %365 = vmatprep.subr.mxu0 0.0
      %366 = vmatpush1.msra.mxu0 0.0
      %367 = vmatprep.subr.mxu0 0.0
      %368 = vmatpush1.msra.mxu0 0.0
      %369 = vmatprep.subr.mxu0 0.0
      %370 = vmatpush1.msra.mxu0 0.0
      %371 = vmatprep.subr.mxu0 0.0
      %372 = vmatpush1.msra.mxu0 0.0
      %373 = vmatprep.subr.mxu0 0.0
      %374 = vmatpush1.msra.mxu0 0.0
      %375 = vmatprep.subr.mxu0 0.0
      %376 = vmatpush1.msra.mxu0 0.0
      %377 = vmatprep.subr.mxu0 0.0
      %378 = vmatpush1.msra.mxu0 0.0
      %379 = vmatprep.subr.mxu0 0.0
      %380 = vmatpush1.msra.mxu0 0.0
      %381 = vmatprep.subr.mxu0 0.0
      %382 = vmatpush1.msra.mxu0 0.0
      %383 = vmatprep.subr.mxu0 0.0
      %384 = vmatpush1.msra.mxu0 0.0
      %385 = vmatprep.mubr.f32.mxu0 0.0
      %386 = vmatmul.mubr.f32.gmra.mrb[0].mxu0 %v319
      %v387 = vpop.f32.mrb[0].mxu0
      %v388 = vadd.f32 0.0, %v387
      %v389 = vpop.f32.mrb[0].mxu0
      %v390 = vadd.f32 0.0, %v389
      %391 = vdwg.mxu0
      %392 = vmatprep.subr.mxu0 0.0
      %393 = vmatpush1.msra.mxu0 %v216
      %394 = vmatprep.subr.mxu0 0.0
      %395 = vmatpush1.msra.mxu0 %v225
      %396 = vmatprep.subr.mxu0 0.0
      %397 = vmatpush1.msra.mxu0 %v237
      %398 = vmatprep.subr.mxu0 0.0
      %399 = vmatpush1.msra.mxu0 %v249
      %400 = vmatprep.subr.mxu0 0.0
      %401 = vmatpush1.msra.mxu0 %v261
      %402 = vmatprep.subr.mxu0 0.0
      %403 = vmatpush1.msra.mxu0 %v273
      %404 = vmatprep.subr.mxu0 0.0
      %405 = vmatpush1.msra.mxu0 %v285
      %406 = vmatprep.subr.mxu0 0.0
      %407 = vmatpush1.msra.mxu0 %v297
      %408 = vmatprep.subr.mxu0 0.0
      %409 = vmatpush1.msra.mxu0 %v309
      %410 = vmatprep.subr.mxu0 0.0
      %411 = vmatpush1.msra.mxu0 0.0
      %412 = vmatprep.subr.mxu0 0.0
      %413 = vmatpush1.msra.mxu0 0.0
      %414 = vmatprep.subr.mxu0 0.0
      %415 = vmatpush1.msra.mxu0 0.0
      %416 = vmatprep.subr.mxu0 0.0
      %417 = vmatpush1.msra.mxu0 0.0
      %418 = vmatprep.subr.mxu0 0.0
      %419 = vmatpush1.msra.mxu0 0.0
      %420 = vmatprep.subr.mxu0 0.0
      %421 = vmatpush1.msra.mxu0 0.0
      %422 = vmatprep.subr.mxu0 0.0
      %423 = vmatpush1.msra.mxu0 0.0
      %424 = vmatprep.subr.mxu0 0.0
      %425 = vmatpush1.msra.mxu0 0.0
      %426 = vmatprep.subr.mxu0 0.0
      %427 = vmatpush1.msra.mxu0 0.0
      %428 = vmatprep.subr.mxu0 0.0
      %429 = vmatpush1.msra.mxu0 0.0
      %430 = vmatprep.subr.mxu0 0.0
      %431 = vmatpush1.msra.mxu0 0.0
      %432 = vmatprep.subr.mxu0 0.0
      %433 = vmatpush1.msra.mxu0 0.0
      %434 = vmatprep.subr.mxu0 0.0
      %435 = vmatpush1.msra.mxu0 0.0
      %436 = vmatprep.subr.mxu0 0.0
      %437 = vmatpush1.msra.mxu0 0.0
      %438 = vmatprep.subr.mxu0 0.0
      %439 = vmatpush1.msra.mxu0 0.0
      %440 = vmatprep.subr.mxu0 0.0
      %441 = vmatpush1.msra.mxu0 0.0
      %442 = vmatprep.subr.mxu0 0.0
      %443 = vmatpush1.msra.mxu0 0.0
      %444 = vmatprep.subr.mxu0 0.0
      %445 = vmatpush1.msra.mxu0 0.0
      %446 = vmatprep.subr.mxu0 0.0
      %447 = vmatpush1.msra.mxu0 0.0
      %448 = vmatprep.subr.mxu0 0.0
      %449 = vmatpush1.msra.mxu0 0.0
      %450 = vmatprep.subr.mxu0 0.0
      %451 = vmatpush1.msra.mxu0 0.0
      %452 = vmatprep.subr.mxu0 0.0
      %453 = vmatpush1.msra.mxu0 0.0
      %454 = vmatprep.subr.mxu0 0.0
      %455 = vmatpush1.msra.mxu0 0.0
      %456 = vmatprep.mubr.f32.mxu0 0.0
      %457 = vmatmul.mubr.f32.gmra.mrb[0].mxu0 %v319
      %v458 = vpop.f32.mrb[0].mxu0
      %v459 = vadd.f32 0.0, %v458
      %v460 = vpop.f32.mrb[0].mxu0
      %461 = vdwg.mxu0
      %462 = vst [vmem:[%s205] sm:$0xff] %v388
      %463 = vst [vmem:[%s205 + $0x8] sm:$0xff] %v390
      %vm464 = vcmask 261120
      %465 = vst.msk [vmem:[%s205 + $0x10] sm:$0xff] %vm464, %v459
      %v466 = vld [vmem:[%s2] sm:$0x7]
      %v468 = vlaneseq
      %v469 = vshrl.u32 %v468, 7
      %v470 = vsub.s32 0, %v469
      %v471 = vrot.slane %v466, %v470
      %v472 = vlaneseq
      %v473 = vshrl.u32 %v472, 7
      %v474 = vsub.s32 1, %v473
      %v475 = vrot.slane %v466, %v474
      %v476 = vlaneseq
      %v477 = vshrl.u32 %v476, 7
      %v478 = vsub.s32 2, %v477
      %v479 = vrot.slane %v466, %v478
      %v483 = vmul.f32 %v388, %v471
      %v484 = vmul.f32 %v390, %v475
      %v485 = vmul.f32 %v459, %v479
      %v486 = vadd.f32 %v483, %v484
      %v487 = vsel %vm464, %v485, 0.0
      %v488 = vadd.f32 %v486, %v487
      %489 = vadd.xlane.f32.xlu0 %v488
      %v490 = vpop.xlane.xlu0 %489
      %v491 = vmul.f32 %v483, %v483
      %v492 = vmul.f32 %v484, %v484
      %v493 = vmul.f32 %v485, %v485
      %v494 = vadd.f32 %v491, %v492
      %v495 = vsel %vm464, %v493, 0.0
      %v496 = vadd.f32 %v494, %v495
      %497 = vadd.xlane.f32.xlu0 %v496
      %v498 = vpop.xlane.xlu0 %497
      %vm499 = vcmask 7168
      %500 = vst.msk [vmem:[%s210] sm:$0xff] %vm499, %v490
      %501 = vst.msk [vmem:[%s210 + $0x8] sm:$0xff] %vm499, %v498
      %p502 = scmp.lt.s32.totalorder %s16, 1
      %s503 = scalar_select %p502, %s16, 1
      %s504 = smul.addr %s503, 3
      %s505 = smul.addr %s504, 8
      %s506 = scalar_lea.vmem %s3, %s505
      %p507 = scmp.lt.s32.totalorder %s16, 1
      %s508 = scalar_select %p507, %s16, 1
      %s509 = smul.addr %s508, 2
      %s510 = smul.addr %s509, 8
      %s511 = scalar_lea.vmem %s4, %s510
      // Predicated region
      $region33: #{residual_forward.3} parent=31 // pred_check
        %p512 = pneg %p102
      $region34: #{residual_forward.3} parent=31 // pred_check_branch
        %514 = sbr.rel (%p512) target = $region36
      $region35: #{residual_forward.3} parent=31 // pred_region
        _
      $region36: #{residual_forward.3} parent=31 // pred_fallthru
        _
      // Predicated region
      $region37: #{residual_forward.3} parent=31 // pred_check
        %p515 = pneg %p128
      $region38: #{residual_forward.3} parent=31 // pred_check_branch
        %517 = sbr.rel (%p515) target = $region40
      $region39: #{residual_forward.3} parent=31 // pred_region
        _
      $region40: #{residual_forward.3} parent=31 // pred_fallthru
        _
    $region32: #{residual_forward.3} parent=5 // pred_fallthru
      _
    %p518 = scmp.le.s32.totalorder 2, %s11
    // Predicated region
    $region41: #{residual_forward.3} parent=5 // pred_check
      %p519 = pneg %p518
    $region42: #{residual_forward.3} parent=5 // pred_check_branch
      %521 = sbr.rel (%p519) target = $region44
    $region43: #{residual_forward.3} parent=5 // pred_region
      %s522 = ssub.s32 %s11, 2
      // Predicated region
      $region45: #{residual_forward.3} parent=43 // pred_check
        %p523 = pneg %p108
      $region46: #{residual_forward.3} parent=43 // pred_check_branch
        %525 = sbr.rel (%p523) target = $region48
      $region47: #{residual_forward.3} parent=43 // pred_region
        %p526 = scmp.lt.s32.totalorder %s17, 1
        %s527 = scalar_select %p526, %s17, 1
        %s528 = smul.addr %s527, 3
        %s529 = smul.addr %s528, 8
        %s530 = scalar_lea.vmem %s3, %s529
      $region48: #{residual_forward.3} parent=43 // pred_fallthru
        _
      // Predicated region
      $region49: #{residual_forward.3} parent=43 // pred_check
        %p531 = pneg %p134
      $region50: #{residual_forward.3} parent=43 // pred_check_branch
        %533 = sbr.rel (%p531) target = $region52
      $region51: #{residual_forward.3} parent=43 // pred_region
        %p534 = scmp.lt.s32.totalorder %s17, 1
        %s535 = scalar_select %p534, %s17, 1
        %s536 = smul.addr %s535, 2
        %s537 = smul.addr %s536, 8
        %s538 = scalar_lea.vmem %s4, %s537
      $region52: #{residual_forward.3} parent=43 // pred_fallthru
        _
    $region44: #{residual_forward.3} parent=5 // pred_fallthru
      _
  $region6: #{residual_forward.3} parent=0 // loop_footer
    %s15 = sadd.s32 1, %s11
  $region7: #{residual_forward.3} parent=0 // loop_footer_branch
    %10 = sbr.rel target = $region3
  $region8: #{residual_forward.3} parent=0 // loop_exit
    _

// kernel: residual_forward.5
$region0: #{residual_forward.5}
  #allocation0 [shape = 'u32[]', space=smem, size = 0x4, offset = 0x4, fixed_abs, tag = 'smem constant byte address 0x4 - core index']
  #allocation1 [shape = 'u32[144,128]{1,0:T(1,128)}', space=vmem, size = 0x12000, scoped, tag = 'internal scratch']
  %s0 = inlined_call_operand.vmem [shape: f32[2,8,16,18], index: 0, kind: input, shape index: {}]
  %s1 = inlined_call_operand.vmem [shape: f32[2,8,16,16], index: 1, kind: input, shape index: {}]
  %s2 = inlined_call_operand.vmem [shape: f32[2,8,16,1], index: 2, kind: input, shape index: {}]
  %s3 = inlined_call_operand.hbm [shape: f32[2,8,16,16], index: 3, kind: output, shape index: {}]
  %s4 = sld [smem:[#allocation0]]
  $region45: #{residual_forward.5} parent=0
    _
  %s6 = ssub.s32 1, %s4
  %s7 = scalar_select 0, %s6, %s4
  $region1: #{residual_forward.5} parent=0
    #allocation2 [shape = 'u8[131072]{0}', space=vmem, size = 0x20000, scoped, tag = 'output window, operand 0']
    #allocation3 [shape = 's32[2]{0}', space=sflag, size = 0x8, scoped, tag = 'scoped memory for residual_forward.5']
    %8 = vsyncpa [#allocation3], 0
    %s9 = scalar_lea.sflag [#allocation3], 1
    %10 = vsyncpa %s9, 0
    loop: start=0, step=1, limit=4
    $region2: #{residual_forward.5} parent=1 // loop_pre_header
      _
    $region3: #{residual_forward.5} parent=1 // loop_header
      %s12 = sphi 0, %s16
      %p13 = scmp.ge.s32.totalorder %s12, 4
      %s22 = sphi 0, %s24
      %s25 = sphi 0, %s22
      %s26 = sphi 0, %s25
      %s42 = sphi 0, %s26
      %s48 = sphi 0, %s50
      %s51 = sphi 0, %s48
      %s52 = sphi 0, %s51
      %s68 = sphi 0, %s52
      %s72 = sphi 0, %s72
      %s74 = sphi 0, %s72
      %s75 = sphi 0, %s74
      %s89 = sphi 0, %s75
      %s95 = sphi 0, %s97
      %s98 = sphi 0, %s95
      %s99 = sphi 0, %s98
      %s115 = sphi 0, %s99
    $region4: #{residual_forward.5} parent=1 // loop_header_branch
      %15 = sbr.rel (%p13) target = $region8
    $region5: #{residual_forward.5} parent=1 // loop_body
      %s17 = ssub.s32 %s12, 1
      %s18 = ssub.s32 %s12, 2
      %s19 = sadd.s32 %s12, 1
      %s20 = ssub.s32 %s12, %s19
      %p21 = scmp.eq.s32.totalorder %s20, 0
      %s23 = sadd.s32 %s22, 1
      %s24 = scalar_select %p21, %s22, %s23
      %p27 = pneg %p21
      %p28 = scmp.eq.s32.totalorder %s12, 1
      %p29 = por %p27, %p28
      %p30 = scmp.ne.s32.totalorder %s22, %s25
      %p31 = scmp.eq.s32.totalorder %s12, 0
      %p32 = por %p30, %p31
      %p33 = scmp.ne.s32.totalorder %s22, %s25
      %p34 = scmp.eq.s32.totalorder %s17, 1
      %p35 = por %p33, %p34
      %p36 = scmp.ne.s32.totalorder %s25, %s26
      %p37 = scmp.eq.s32.totalorder %s17, 0
      %p38 = por %p36, %p37
      %p39 = scmp.ne.s32.totalorder %s25, %s26
      %p40 = scmp.eq.s32.totalorder %s18, 1
      %p41 = por %p39, %p40
      %p43 = scmp.ne.s32.totalorder %s26, %s42
      %p44 = scmp.eq.s32.totalorder %s18, 0
      %p45 = por %p43, %p44
      %s46 = ssub.s32 %s12, %s19
      %p47 = scmp.eq.s32.totalorder %s46, 0
      %s49 = sadd.s32 %s48, 1
      %s50 = scalar_select %p47, %s48, %s49
      %p53 = pneg %p47
      %p54 = scmp.eq.s32.totalorder %s12, 1
      %p55 = por %p53, %p54
      %p56 = scmp.ne.s32.totalorder %s48, %s51
      %p57 = scmp.eq.s32.totalorder %s12, 0
      %p58 = por %p56, %p57
      %p59 = scmp.ne.s32.totalorder %s48, %s51
      %p60 = scmp.eq.s32.totalorder %s17, 1
      %p61 = por %p59, %p60
      %p62 = scmp.ne.s32.totalorder %s51, %s52
      %p63 = scmp.eq.s32.totalorder %s17, 0
      %p64 = por %p62, %p63
      %p65 = scmp.ne.s32.totalorder %s51, %s52
      %p66 = scmp.eq.s32.totalorder %s18, 1
      %p67 = por %p65, %p66
      %p69 = scmp.ne.s32.totalorder %s52, %s68
      %p70 = scmp.eq.s32.totalorder %s18, 0
      %p71 = por %p69, %p70
      %s73 = sadd.s32 %s72, 1
      %p76 = scmp.eq.s32.totalorder %s12, 1
      %p77 = scmp.ne.s32.totalorder %s72, %s74
      %p78 = scmp.eq.s32.totalorder %s12, 0
      %p79 = por %p77, %p78
      %p80 = scmp.ne.s32.totalorder %s72, %s74
      %p81 = scmp.eq.s32.totalorder %s17, 1
      %p82 = por %p80, %p81
      %p83 = scmp.ne.s32.totalorder %s74, %s75
      %p84 = scmp.eq.s32.totalorder %s17, 0
      %p85 = por %p83, %p84
      %p86 = scmp.ne.s32.totalorder %s74, %s75
      %p87 = scmp.eq.s32.totalorder %s18, 1
      %p88 = por %p86, %p87
      %p90 = scmp.ne.s32.totalorder %s75, %s89
      %p91 = scmp.eq.s32.totalorder %s18, 0
      %p92 = por %p90, %p91
      %s93 = ssub.s32 %s12, %s19
      %p94 = scmp.eq.s32.totalorder %s93, 0
      %s96 = sadd.s32 %s95, 1
      %s97 = scalar_select %p94, %s95, %s96
      %p100 = pneg %p94
      %p101 = scmp.eq.s32.totalorder %s12, 1
      %p102 = por %p100, %p101
      %p103 = scmp.ne.s32.totalorder %s95, %s98
      %p104 = scmp.eq.s32.totalorder %s12, 0
      %p105 = por %p103, %p104
      %p106 = scmp.ne.s32.totalorder %s95, %s98
      %p107 = scmp.eq.s32.totalorder %s17, 1
      %p108 = por %p106, %p107
      %p109 = scmp.ne.s32.totalorder %s98, %s99
      %p110 = scmp.eq.s32.totalorder %s17, 0
      %p111 = por %p109, %p110
      %p112 = scmp.ne.s32.totalorder %s98, %s99
      %p113 = scmp.eq.s32.totalorder %s18, 1
      %p114 = por %p112, %p113
      %p116 = scmp.ne.s32.totalorder %s99, %s115
      %p117 = scmp.eq.s32.totalorder %s18, 0
      %p118 = por %p116, %p117
      %p119 = scmp.le.s32.totalorder 1, %s12
      %p120 = scmp.lt.s32.totalorder %s12, 3
      %p121 = pnand %p119, %p120
      %p122 = pneg %p121
      // Predicated region
      $region9: #{residual_forward.5} parent=5 // pred_check
        _
      $region10: #{residual_forward.5} parent=5 // pred_check_branch
        %124 = sbr.rel (%p121) target = $region12
      $region11: #{residual_forward.5} parent=5 // pred_region
        %s125 = ssub.s32 %s12, 1
        // Predicated region
        $region13: #{residual_forward.5} parent=11 // pred_check
          %p126 = pneg %p85
        $region14: #{residual_forward.5} parent=11 // pred_check_branch
          %128 = sbr.rel (%p126) target = $region16
        $region15: #{residual_forward.5} parent=11 // pred_region
          _
        $region16: #{residual_forward.5} parent=11 // pred_fallthru
          _
      $region12: #{residual_forward.5} parent=5 // pred_fallthru
        _
      %p129 = scmp.lt.s32.totalorder %s12, 2
      // Predicated region
      $region17: #{residual_forward.5} parent=5 // pred_check
        %p130 = pneg %p129
      $region18: #{residual_forward.5} parent=5 // pred_check_branch
        %132 = sbr.rel (%p130) target = $region20
      $region19: #{residual_forward.5} parent=5 // pred_region
        // Predicated region
        $region21: #{residual_forward.5} parent=19 // pred_check
          %p133 = pneg %p32
        $region22: #{residual_forward.5} parent=19 // pred_check_branch
          %135 = sbr.rel (%p133) target = $region24
        $region23: #{residual_forward.5} parent=19 // pred_region
          %p136 = scmp.lt.s32.totalorder %s12, 1
          %s137 = scalar_select %p136, %s12, 1
          %s138 = smul.addr %s137, 16
          %s139 = smul.addr %s138, 8
          %s140 = scalar_lea.vmem %s0, %s139
        $region24: #{residual_forward.5} parent=19 // pred_fallthru
          _
        // Predicated region
        $region25: #{residual_forward.5} parent=19 // pred_check
          %p141 = pneg %p58
        $region26: #{residual_forward.5} parent=19 // pred_check_branch
          %143 = sbr.rel (%p141) target = $region28
        $region27: #{residual_forward.5} parent=19 // pred_region
          %p144 = scmp.lt.s32.totalorder %s12, 1
          %s145 = scalar_select %p144, %s12, 1
          %s146 = smul.addr %s145, 16
          %s147 = smul.addr %s146, 8
          %s148 = scalar_lea.vmem %s1, %s147
        $region28: #{residual_forward.5} parent=19 // pred_fallthru
          _
      $region20: #{residual_forward.5} parent=5 // pred_fallthru
        _
      %p149 = scmp.le.s32.totalorder 1, %s12
      %p150 = scmp.lt.s32.totalorder %s12, 3
      %p151 = pnand %p149, %p150
      %p152 = pneg %p151
      // Predicated region
      $region29: #{residual_forward.5} parent=5 // pred_check
        _
      $region30: #{residual_forward.5} parent=5 // pred_check_branch
        %154 = sbr.rel (%p151) target = $region32
      $region31: #{residual_forward.5} parent=5 // pred_region
        %s155 = ssub.s32 %s12, 1
        %p156 = scmp.lt.s32.totalorder %s17, 1
        %s157 = scalar_select %p156, %s17, 1
        %s158 = smul.addr %s157, 16
        %s159 = smul.addr %s158, 8
        %s160 = scalar_lea.vmem %s0, %s159
        %p161 = pneg %p38
        %p162 = pneg %p35
        %p163 = scmp.lt.s32.totalorder %s17, 1
        %s164 = scalar_select %p163, %s17, 1
        %s165 = smul.addr %s164, 16
        %s166 = smul.addr %s165, 8
        %s167 = scalar_lea.vmem %s1, %s166
        %p168 = pneg %p64
        %p169 = pneg %p61
        %p170 = pneg %p85
        %p171 = pneg %p82
        %p172 = pneg %p111
        %p173 = pneg %p108
        %s174 = sand.u32 %s98, 1
        %s175 = scalar_lea.sflag [#allocation3], %s174
        %s176 = sand.u32 %s98, 1
        %s177 = smul.addr %s176, 128
        %s178 = scalar_lea.vmem [#allocation2], %s177
        %p179 = scmp.lt.s32.totalorder %s17, 1
        %s180 = scalar_select %p179, %s17, 1
        %s181 = smul.addr %s180, 16
        %s182 = smul.addr %s181, 8
        %s183 = scalar_lea.vmem %s0, %s182
        %p184 = scmp.lt.s32.totalorder %s17, 1
        %s185 = scalar_select %p184, %s17, 1
        %s186 = smul.addr %s185, 16
        %s187 = smul.addr %s186, 8
        %s188 = scalar_lea.vmem %s1, %s187
        %v189 = vld [vmem:[%s183] sm:$0xff]
        %v190 = vld [vmem:[%s183 + $0x8] sm:$0xff]
        %v191 = vld [vmem:[%s183 + $0x10] sm:$0xff]
        %v192 = vld [vmem:[%s183 + $0x18] sm:$0xff]
        %v193 = vld [vmem:[%s183 + $0x20] sm:$0xff]
        %v194 = vld [vmem:[%s183 + $0x28] sm:$0xff]
        %v195 = vld [vmem:[%s183 + $0x30] sm:$0xff]
        %v196 = vld [vmem:[%s183 + $0x38] sm:$0xff]
        %v197 = vld [vmem:[%s183 + $0x40] sm:$0xff]
        %v198 = vld [vmem:[%s183 + $0x48] sm:$0xff]
        %v199 = vld [vmem:[%s183 + $0x50] sm:$0xff]
        %v200 = vld [vmem:[%s183 + $0x58] sm:$0xff]
        %v201 = vld [vmem:[%s183 + $0x60] sm:$0xff]
        %v202 = vld [vmem:[%s183 + $0x68] sm:$0xff]
        %v203 = vld [vmem:[%s183 + $0x70] sm:$0xff]
        %v204 = vld [vmem:[%s183 + $0x78] sm:$0xff]
        %v205 = vld [vmem:[%s188] sm:$0xff]
        %v206 = vld [vmem:[%s188 + $0x8] sm:$0xff]
        %v207 = vld [vmem:[%s188 + $0x10] sm:$0xff]
        %v208 = vld [vmem:[%s188 + $0x18] sm:$0xff]
        %v209 = vld [vmem:[%s188 + $0x20] sm:$0xff]
        %v210 = vld [vmem:[%s188 + $0x28] sm:$0xff]
        %v211 = vld [vmem:[%s188 + $0x30] sm:$0xff]
        %v212 = vld [vmem:[%s188 + $0x38] sm:$0xff]
        %v213 = vld [vmem:[%s188 + $0x40] sm:$0xff]
        %v214 = vld [vmem:[%s188 + $0x48] sm:$0xff]
        %v215 = vld [vmem:[%s188 + $0x50] sm:$0xff]
        %v216 = vld [vmem:[%s188 + $0x58] sm:$0xff]
        %v217 = vld [vmem:[%s188 + $0x60] sm:$0xff]
        %v218 = vld [vmem:[%s188 + $0x68] sm:$0xff]
        %v219 = vld [vmem:[%s188 + $0x70] sm:$0xff]
        %v220 = vld [vmem:[%s188 + $0x78] sm:$0xff]
        %v221 = vld [vmem:[%s2] sm:$0xff]
        %v222 = vld [vmem:[%s2 + $0x8] sm:$0xff]
        %v223 = vld [vmem:[%s2 + $0x10] sm:$0xff]
        %v224 = vld [vmem:[%s2 + $0x18] sm:$0xff]
        %v225 = vld [vmem:[%s2 + $0x20] sm:$0xff]
        %v226 = vld [vmem:[%s2 + $0x28] sm:$0xff]
        %v227 = vld [vmem:[%s2 + $0x30] sm:$0xff]
        %v228 = vld [vmem:[%s2 + $0x38] sm:$0xff]
        %v229 = vld [vmem:[%s2 + $0x40] sm:$0xff]
        %v230 = vld [vmem:[%s2 + $0x48] sm:$0xff]
        %v231 = vld [vmem:[%s2 + $0x50] sm:$0xff]
        %v232 = vld [vmem:[%s2 + $0x58] sm:$0xff]
        %v233 = vld [vmem:[%s2 + $0x60] sm:$0xff]
        %v234 = vld [vmem:[%s2 + $0x68] sm:$0xff]
        %v235 = vld [vmem:[%s2 + $0x70] sm:$0xff]
        %v236 = vld [vmem:[%s2 + $0x78] sm:$0xff]
        %238 = vset.pattern.permute.xlu0 0
        %239 = vperm.xlu0 %238, %v221
        %v240 = vpop.permute.xlu0 %239
        %243 = vset.pattern.permute.xlu0 0
        %244 = vperm.xlu0 %243, %v222
        %v245 = vpop.permute.xlu0 %244
        %248 = vset.pattern.permute.xlu0 0
        %249 = vperm.xlu0 %248, %v223
        %v250 = vpop.permute.xlu0 %249
        %253 = vset.pattern.permute.xlu0 0
        %254 = vperm.xlu0 %253, %v224
        %v255 = vpop.permute.xlu0 %254
        %258 = vset.pattern.permute.xlu0 0
        %259 = vperm.xlu0 %258, %v225
        %v260 = vpop.permute.xlu0 %259
        %263 = vset.pattern.permute.xlu0 0
        %264 = vperm.xlu0 %263, %v226
        %v265 = vpop.permute.xlu0 %264
        %268 = vset.pattern.permute.xlu0 0
        %269 = vperm.xlu0 %268, %v227
        %v270 = vpop.permute.xlu0 %269
        %273 = vset.pattern.permute.xlu0 0
        %274 = vperm.xlu0 %273, %v228
        %v275 = vpop.permute.xlu0 %274
        %278 = vset.pattern.permute.xlu0 0
        %279 = vperm.xlu0 %278, %v229
        %v280 = vpop.permute.xlu0 %279
        %283 = vset.pattern.permute.xlu0 0
        %284 = vperm.xlu0 %283, %v230
        %v285 = vpop.permute.xlu0 %284
        %288 = vset.pattern.permute.xlu0 0
        %289 = vperm.xlu0 %288, %v231
        %v290 = vpop.permute.xlu0 %289
        %293 = vset.pattern.permute.xlu0 0
        %294 = vperm.xlu0 %293, %v232
        %v295 = vpop.permute.xlu0 %294
        %298 = vset.pattern.permute.xlu0 0
        %299 = vperm.xlu0 %298, %v233
        %v300 = vpop.permute.xlu0 %299
        %303 = vset.pattern.permute.xlu0 0
        %304 = vperm.xlu0 %303, %v234
        %v305 = vpop.permute.xlu0 %304
        %308 = vset.pattern.permute.xlu0 0
        %309 = vperm.xlu0 %308, %v235
        %v310 = vpop.permute.xlu0 %309
        %313 = vset.pattern.permute.xlu0 0
        %314 = vperm.xlu0 %313, %v236
        %v315 = vpop.permute.xlu0 %314
        %v317 = vmul.f32 %v189, %v240
        %v318 = vmul.f32 %v190, %v245
        %v319 = vmul.f32 %v191, %v250
        %v320 = vmul.f32 %v192, %v255
        %v321 = vmul.f32 %v193, %v260
        %v322 = vmul.f32 %v194, %v265
        %v323 = vmul.f32 %v195, %v270
        %v324 = vmul.f32 %v196, %v275
        %v325 = vmul.f32 %v197, %v280
        %v326 = vmul.f32 %v198, %v285
        %v327 = vmul.f32 %v199, %v290
        %v328 = vmul.f32 %v200, %v295
        %v329 = vmul.f32 %v201, %v300
        %v330 = vmul.f32 %v202, %v305
        %v331 = vmul.f32 %v203, %v310
        %v332 = vmul.f32 %v204, %v315
        %v333 = vadd.f32 %v205, %v317
        %v334 = vadd.f32 %v206, %v318
        %v335 = vadd.f32 %v207, %v319
        %v336 = vadd.f32 %v208, %v320
        %v337 = vadd.f32 %v209, %v321
        %v338 = vadd.f32 %v210, %v322
        %v339 = vadd.f32 %v211, %v323
        %v340 = vadd.f32 %v212, %v324
        %v341 = vadd.f32 %v213, %v325
        %v342 = vadd.f32 %v214, %v326
        %v343 = vadd.f32 %v215, %v327
        %v344 = vadd.f32 %v216, %v328
        %v345 = vadd.f32 %v217, %v329
        %v346 = vadd.f32 %v218, %v330
        %v347 = vadd.f32 %v219, %v331
        %v348 = vadd.f32 %v220, %v332
        %s349 = scalar_lea.vmem %s2, 128
        %v350 = vld [vmem:[%s349] sm:$0xff]
        %v351 = vld [vmem:[%s349 + $0x8] sm:$0xff]
        %v352 = vld [vmem:[%s349 + $0x10] sm:$0xff]
        %v353 = vld [vmem:[%s349 + $0x18] sm:$0xff]
        %v354 = vld [vmem:[%s349 + $0x20] sm:$0xff]
        %v355 = vld [vmem:[%s349 + $0x28] sm:$0xff]
        %v356 = vld [vmem:[%s349 + $0x30] sm:$0xff]
        %v357 = vld [vmem:[%s349 + $0x38] sm:$0xff]
        %v358 = vld [vmem:[%s349 + $0x40] sm:$0xff]
        %v359 = vld [vmem:[%s349 + $0x48] sm:$0xff]
        %v360 = vld [vmem:[%s349 + $0x50] sm:$0xff]
        %v361 = vld [vmem:[%s349 + $0x58] sm:$0xff]
        %v362 = vld [vmem:[%s349 + $0x60] sm:$0xff]
        %v363 = vld [vmem:[%s349 + $0x68] sm:$0xff]
        %v364 = vld [vmem:[%s349 + $0x70] sm:$0xff]
        %v365 = vld [vmem:[%s349 + $0x78] sm:$0xff]
        %367 = vset.pattern.permute.xlu0 0
        %368 = vperm.xlu0 %367, %v350
        %v369 = vpop.permute.xlu0 %368
        %372 = vset.pattern.permute.xlu0 0
        %373 = vperm.xlu0 %372, %v351
        %v374 = vpop.permute.xlu0 %373
        %377 = vset.pattern.permute.xlu0 0
        %378 = vperm.xlu0 %377, %v352
        %v379 = vpop.permute.xlu0 %378
        %382 = vset.pattern.permute.xlu0 0
        %383 = vperm.xlu0 %382, %v353
        %v384 = vpop.permute.xlu0 %383
        %387 = vset.pattern.permute.xlu0 0
        %388 = vperm.xlu0 %387, %v354
        %v389 = vpop.permute.xlu0 %388
        %392 = vset.pattern.permute.xlu0 0
        %393 = vperm.xlu0 %392, %v355
        %v394 = vpop.permute.xlu0 %393
        %397 = vset.pattern.permute.xlu0 0
        %398 = vperm.xlu0 %397, %v356
        %v399 = vpop.permute.xlu0 %398
        %402 = vset.pattern.permute.xlu0 0
        %403 = vperm.xlu0 %402, %v357
        %v404 = vpop.permute.xlu0 %403
        %407 = vset.pattern.permute.xlu0 0
        %408 = vperm.xlu0 %407, %v358
        %v409 = vpop.permute.xlu0 %408
        %412 = vset.pattern.permute.xlu0 0
        %413 = vperm.xlu0 %412, %v359
        %v414 = vpop.permute.xlu0 %413
        %417 = vset.pattern.permute.xlu0 0
        %418 = vperm.xlu0 %417, %v360
        %v419 = vpop.permute.xlu0 %418
        %422 = vset.pattern.permute.xlu0 0
        %423 = vperm.xlu0 %422, %v361
        %v424 = vpop.permute.xlu0 %423
        %427 = vset.pattern.permute.xlu0 0
        %428 = vperm.xlu0 %427, %v362
        %v429 = vpop.permute.xlu0 %428
        %432 = vset.pattern.permute.xlu0 0
        %433 = vperm.xlu0 %432, %v363
        %v434 = vpop.permute.xlu0 %433
        %437 = vset.pattern.permute.xlu0 0
        %438 = vperm.xlu0 %437, %v364
        %v439 = vpop.permute.xlu0 %438
        %442 = vset.pattern.permute.xlu0 0
        %443 = vperm.xlu0 %442, %v365
        %v444 = vpop.permute.xlu0 %443
        %v446 = vadd.f32 %v333, %v369
        %v447 = vadd.f32 %v334, %v374
        %v448 = vadd.f32 %v335, %v379
        %v449 = vadd.f32 %v336, %v384
        %v450 = vadd.f32 %v337, %v389
        %v451 = vadd.f32 %v338, %v394
        %v452 = vadd.f32 %v339, %v399
        %v453 = vadd.f32 %v340, %v404
        %v454 = vadd.f32 %v341, %v409
        %v455 = vadd.f32 %v342, %v414
        %v456 = vadd.f32 %v343, %v419
        %v457 = vadd.f32 %v344, %v424
        %v458 = vadd.f32 %v345, %v429
        %v459 = vadd.f32 %v346, %v434
        %v460 = vadd.f32 %v347, %v439
        %v461 = vadd.f32 %v348, %v444
        %vm462 = vcmask 130048
        %463 = vst.msk [vmem:[%s178] sm:$0xff] %vm462, %v446
        %464 = vst.msk [vmem:[%s178 + $0x8] sm:$0xff] %vm462, %v447
        %465 = vst.msk [vmem:[%s178 + $0x10] sm:$0xff] %vm462, %v448
        %466 = vst.msk [vmem:[%s178 + $0x18] sm:$0xff] %vm462, %v449
        %467 = vst.msk [vmem:[%s178 + $0x20] sm:$0xff] %vm462, %v450
        %468 = vst.msk [vmem:[%s178 + $0x28] sm:$0xff] %vm462, %v451
        %469 = vst.msk [vmem:[%s178 + $0x30] sm:$0xff] %vm462, %v452
        %470 = vst.msk [vmem:[%s178 + $0x38] sm:$0xff] %vm462, %v453
        %471 = vst.msk [vmem:[%s178 + $0x40] sm:$0xff] %vm462, %v454
        %472 = vst.msk [vmem:[%s178 + $0x48] sm:$0xff] %vm462, %v455
        %473 = vst.msk [vmem:[%s178 + $0x50] sm:$0xff] %vm462, %v456
        %474 = vst.msk [vmem:[%s178 + $0x58] sm:$0xff] %vm462, %v457
        %475 = vst.msk [vmem:[%s178 + $0x60] sm:$0xff] %vm462, %v458
        %476 = vst.msk [vmem:[%s178 + $0x68] sm:$0xff] %vm462, %v459
        %477 = vst.msk [vmem:[%s178 + $0x70] sm:$0xff] %vm462, %v460
        %478 = vst.msk [vmem:[%s178 + $0x78] sm:$0xff] %vm462, %v461
        %s479 = sand.u32 %s98, 1
        %s480 = scalar_lea.sflag [#allocation3], %s479
        %s481 = sand.u32 %s98, 1
        %s482 = smul.addr %s481, 128
        %s483 = scalar_lea.vmem [#allocation2], %s482
        // Predicated region
        $region33: #{residual_forward.5} parent=31 // pred_check
          %p484 = pneg %p108
        $region34: #{residual_forward.5} parent=31 // pred_check_branch
          %486 = sbr.rel (%p484) target = $region36
        $region35: #{residual_forward.5} parent=31 // pred_region
          %s488 = ssub.s32 2048, 2048
          %489 = vsyncadd %s480, %s488
          %s490 = smul.addr %s17, 16
          %s491 = smul.addr %s490, 128
          %s492 = scalar_lea.hbm %s3, %s491
          %s493 = sshll.u32 %s483, 4
          %s494 = int_to_ptr.vmem [resolvable:$true] %s493
          %499 = dma.vmem_to_hbm [thread:$0]  %s494, 2048, %s492, %s480, 128, 128, 8
        $region36: #{residual_forward.5} parent=31 // pred_fallthru
          _
      $region32: #{residual_forward.5} parent=5 // pred_fallthru
        _
      %p500 = scmp.le.s32.totalorder 2, %s12
      // Predicated region
      $region37: #{residual_forward.5} parent=5 // pred_check
        %p501 = pneg %p500
      $region38: #{residual_forward.5} parent=5 // pred_check_branch
        %503 = sbr.rel (%p501) target = $region40
      $region39: #{residual_forward.5} parent=5 // pred_region
        %s504 = ssub.s32 %s12, 2
        // Predicated region
        $region41: #{residual_forward.5} parent=39 // pred_check
          %p505 = pneg %p114
        $region42: #{residual_forward.5} parent=39 // pred_check_branch
          %507 = sbr.rel (%p505) target = $region44
        $region43: #{residual_forward.5} parent=39 // pred_region
          %s508 = sand.u32 %s99, 1
          %s509 = scalar_lea.sflag [#allocation3], %s508
          %s510 = sand.u32 %s99, 1
          %s511 = smul.addr %s510, 128
          %s512 = scalar_lea.vmem [#allocation2], %s511
          %513 = dma.done %s509, 2048
        $region44: #{residual_forward.5} parent=39 // pred_fallthru
          _
      $region40: #{residual_forward.5} parent=5 // pred_fallthru
        _
    $region6: #{residual_forward.5} parent=1 // loop_footer
      %s16 = sadd.s32 1, %s12
    $region7: #{residual_forward.5} parent=1 // loop_footer_branch
      %11 = sbr.rel target = $region3
    $region8: #{residual_forward.5} parent=1 // loop_exit
      _
    %514 = vsyncpa [#allocation3], 1
    %s515 = scalar_lea.sflag [#allocation3], 1
    %516 = vsyncpa %s515, 1

</llo_original>
